<compile_context>
chip_gen: v6e
topology: v6e:2x2x1
jax: 0.10.0
libtpu: 0.0.40
codegen_flags: <defaults>
</compile_context>

<pallas_src>
import math

import jax
import jax.numpy as jnp
from jax.experimental import pallas as pl
from jax.experimental.pallas import tpu as pltpu

LN_EPS = 1e-5
_INV_SQRT2 = 1.0 / math.sqrt(2.0)


# ------------------------------ Pallas kernel --------------------------------
def _dense_block_kernel(x_ref, nw_ref, nb_ref, w1_ref, b1_ref, w2_ref, b2_ref, o_ref):
    """out = x + W2( GELU( W1( LayerNorm(x) ) ) ), fully fused in VMEM."""
    x = x_ref[...]                                            # (bm, D) f32
    # LayerNorm (statistics in f32)
    mean = jnp.mean(x, axis=-1, keepdims=True)
    c = x - mean
    var = jnp.mean(c * c, axis=-1, keepdims=True)
    xn = c * jax.lax.rsqrt(var + LN_EPS) * nw_ref[...] + nb_ref[...]
    # Linear 1 (bf16 MXU matmul, f32 accumulate)
    h = jnp.dot(xn.astype(jnp.bfloat16), w1_ref[...],
                preferred_element_type=jnp.float32) + b1_ref[...]
    # tanh-approx GELU: tanh goes to the EUP (free VLIW slot) instead of the
    # erf polynomial on the VALU.  ~1e-3 vs PyTorch's exact-erf default.
    h = jax.nn.gelu(h, approximate=True)
    # Linear 2 (bf16 MXU matmul, f32 accumulate) + residual
    y = jnp.dot(h.astype(jnp.bfloat16), w2_ref[...],
                preferred_element_type=jnp.float32) + b2_ref[...]
    o_ref[...] = x + y


# ------------------------------ tiling policy ---------------------------------
def _pick_block_rows(n):
    """Fixed MXU-shaped row tiles; the grid grows, not the tile."""
    if n <= 512:
        return n                      # single tile: no grid overhead on 1-TC chips
    for bm in (512, 256, 128, 64, 32, 16, 8):
        if n % bm == 0:
            return bm
    return n                          # odd row count: fall back to one full tile


# ------------------------------ Pallas wrapper --------------------------------
def attention_dense_block(x, params, *, block_rows=None):
    """Fused AttentionDenseBlock.forward on a (..., inner_size) tensor.

    `params` must come from `prepare_params` (bf16 weights, (1, .) f32 biases),
    so the one-time bf16 cast happens outside the per-call jit.
    """
    orig_shape = x.shape
    d = orig_shape[-1]
    x2d = x.reshape(-1, d).astype(jnp.float32)
    n = x2d.shape[0]
    dh = params["w1"].shape[1]

    if block_rows is None:
        block_rows = _pick_block_rows(n)
    assert n % block_rows == 0
    assert block_rows % 8 == 0 or block_rows == n   # (8,128) rule / full-dim exemption
    grid = (n // block_rows,)
    bm = block_rows

    # Explicit VMEM budget (review: bound it for v7x's 64 MiB physical VMEM).
    vmem_bytes = (
        2 * bm * d * 4        # double-buffered x row tile
        + 2 * bm * d * 4      # double-buffered out row tile
        + 2 * d * dh * 2      # bf16 W1 + W2, single-buffered residents
        + (dh + 3 * d) * 4    # biases + LayerNorm params
        + bm * dh * 4         # live f32 GELU intermediate
        + bm * d * 4          # normalized-x temporary
    )
    vmem_limit = int(min(48 * 2**20, max(32 * 2**20, 2 * vmem_bytes)))

    cost = pl.CostEstimate(
        flops=4 * n * d * dh,                                   # two matmuls
        transcendentals=n * dh,                                 # one tanh per GELU elem
        bytes_accessed=2 * d * dh * 2 + 2 * n * d * 4 + (dh + 3 * d) * 4,
    )

    # Weights/biases: whole array resident in VMEM, single copy (index never
    # changes across the grid, so double-buffering would be pure waste).
    weight_spec = pl.BlockSpec(memory_space=pltpu.MemorySpace.VMEM)

    out = pl.pallas_call(
        _dense_block_kernel,
        out_shape=jax.ShapeDtypeStruct((n, d), jnp.float32),
        grid=grid,
        in_specs=[
            pl.BlockSpec((block_rows, d), lambda i: (i, 0)),    # x row tile (pipelined)
            weight_spec,                                        # ln weight (1, d)
            weight_spec,                                        # ln bias   (1, d)
            weight_spec,                                        # W1 (d, dh) bf16
            weight_spec,                                        # b1 (1, dh)
            weight_spec,                                        # W2 (dh, d) bf16
            weight_spec,                                        # b2 (1, d)
        ],
        out_specs=pl.BlockSpec((block_rows, d), lambda i: (i, 0)),
        compiler_params=pltpu.CompilerParams(
            dimension_semantics=("parallel",),
            vmem_limit_bytes=vmem_limit,
        ),
        cost_estimate=cost,
    )(
        x2d,
        params["ln_w"], params["ln_b"],
        params["w1"], params["b1"],
        params["w2"], params["b2"],
    )
    return out.reshape(orig_shape)


# ------------------------------ reference (pure JAX) ---------------------------
def attention_dense_block_ref(x, params):
    """Exact-erf GELU reference, f32 throughout (matches PyTorch defaults)."""
    mean = jnp.mean(x, axis=-1, keepdims=True)
    c = x - mean
    var = jnp.mean(c * c, axis=-1, keepdims=True)
    xn = c * jax.lax.rsqrt(var + LN_EPS) * params["ln_w"] + params["ln_b"]
    h = xn @ params["w1"] + params["b1"]
    h = 0.5 * h * (1.0 + jax.lax.erf(h * _INV_SQRT2))
    return x + h @ params["w2"] + params["b2"]


# ------------------------------ parameter handling -----------------------------
def init_params(key, inner_size, multiplier=4):
    """Mirror torch defaults: LayerNorm(weight=1, bias=0); Linear ~ U(-1/sqrt(in), 1/sqrt(in))."""
    dh = inner_size * multiplier
    k1, k2, k3, k4 = jax.random.split(key, 4)
    lim1 = 1.0 / math.sqrt(inner_size)
    lim2 = 1.0 / math.sqrt(dh)
    return {
        "ln_w": jnp.ones((inner_size,), jnp.float32),
        "ln_b": jnp.zeros((inner_size,), jnp.float32),
        "w1": jax.random.uniform(k1, (inner_size, dh), jnp.float32, -lim1, lim1),
        "b1": jax.random.uniform(k2, (dh,), jnp.float32, -lim1, lim1),
        "w2": jax.random.uniform(k3, (dh, inner_size), jnp.float32, -lim2, lim2),
        "b2": jax.random.uniform(k4, (inner_size,), jnp.float32, -lim2, lim2),
    }


def prepare_params(params):
    """One-time (outside jit) prep: bf16 weights, lane-dense (1, .) f32 biases."""
    d, dh = params["w1"].shape
    return {
        "ln_w": params["ln_w"].reshape(1, d).astype(jnp.float32),
        "ln_b": params["ln_b"].reshape(1, d).astype(jnp.float32),
        "w1": params["w1"].astype(jnp.bfloat16),
        "b1": params["b1"].reshape(1, dh).astype(jnp.float32),
        "w2": params["w2"].astype(jnp.bfloat16),
        "b2": params["b2"].reshape(1, d).astype(jnp.float32),
    }


# ---------------------------------- main --------------------------------------
if __name__ == "__main__":
    batch = 2
    seq = 8
    inner_size = 256      # lane-dense (multiple of 128)
    multiplier = 4        # hidden = 1024

    key = jax.random.PRNGKey(0)
    k_param, k_x = jax.random.split(key)

    params_f32 = init_params(k_param, inner_size, multiplier)
    params_dev = prepare_params(params_f32)   # one-time bf16 cast, outside jit
    x = jax.random.normal(k_x, (batch, seq, inner_size), jnp.float32)

    fwd = jax.jit(attention_dense_block)
    out = fwd(x, params_dev)
    jax.block_until_ready(out)

    ref = attention_dense_block_ref(x, params_f32)

    assert out.shape == (batch, seq, inner_size)
    assert bool(jnp.all(jnp.isfinite(out)))
    # bf16 matmul / f32 accumulate + tanh-GELU vs full-f32 erf reference: ~1e-3.
    max_err = float(jnp.max(jnp.abs(out - ref)))
    assert max_err < 5e-2, f"max abs err {max_err}"
    print("KERNEL_OK")
</pallas_src>

<mosaic_0001>
module attributes {stable_mosaic.version = 11 : i64} {
  func.func @_dense_block_kernel(%arg0: i32, %arg1: memref<16x256xf32, #tpu.memory_space<vmem>>, %arg2: memref<1x256xf32, #tpu.memory_space<vmem>>, %arg3: memref<1x256xf32, #tpu.memory_space<vmem>>, %arg4: memref<256x1024xbf16, #tpu.memory_space<vmem>>, %arg5: memref<1x1024xf32, #tpu.memory_space<vmem>>, %arg6: memref<1024x256xbf16, #tpu.memory_space<vmem>>, %arg7: memref<1x256xf32, #tpu.memory_space<vmem>>, %arg8: memref<16x256xf32, #tpu.memory_space<vmem>>) attributes {dimension_semantics = [#tpu.dimension_semantics<parallel>], iteration_bounds = array<i64: 1>, scalar_prefetch = 0 : i64, scratch_operands = 0 : i64, tpu.core_type = #tpu.core_type<tc>, window_params = [{transform_indices = @transform_0, window_bounds = array<i64: 16, 256>}, {pipeline_mode = #tpu.pipeline_mode<synchronous>, transform_indices = @transform_1, window_bounds = array<i64: 1, 256>}, {pipeline_mode = #tpu.pipeline_mode<synchronous>, transform_indices = @transform_2, window_bounds = array<i64: 1, 256>}, {pipeline_mode = #tpu.pipeline_mode<synchronous>, transform_indices = @transform_3, window_bounds = array<i64: 256, 1024>}, {pipeline_mode = #tpu.pipeline_mode<synchronous>, transform_indices = @transform_4, window_bounds = array<i64: 1, 1024>}, {pipeline_mode = #tpu.pipeline_mode<synchronous>, transform_indices = @transform_5, window_bounds = array<i64: 1024, 256>}, {pipeline_mode = #tpu.pipeline_mode<synchronous>, transform_indices = @transform_6, window_bounds = array<i64: 1, 256>}, {transform_indices = @transform_7, window_bounds = array<i64: 16, 256>}]} {
    %c0 = arith.constant 0 : index
    %c0_0 = arith.constant 0 : index
    %0 = vector.load %arg1[%c0, %c0_0] : memref<16x256xf32, #tpu.memory_space<vmem>>, vector<16x256xf32>
    %cst = arith.constant dense<0.000000e+00> : vector<16xf32>
    %1 = vector.multi_reduction <add>, %0, %cst [1] : vector<16x256xf32> to vector<16xf32>
    %2 = vector.shape_cast %1 : vector<16xf32> to vector<16x1xf32>
    %cst_1 = arith.constant 2.560000e+02 : f32
    %3 = vector.broadcast %cst_1 : f32 to vector<16x1xf32>
    %4 = arith.divf %2, %3 : vector<16x1xf32>
    %5 = vector.broadcast %4 : vector<16x1xf32> to vector<16x256xf32>
    %6 = arith.subf %0, %5 : vector<16x256xf32>
    %7 = arith.mulf %6, %6 : vector<16x256xf32>
    %cst_2 = arith.constant dense<0.000000e+00> : vector<16xf32>
    %8 = vector.multi_reduction <add>, %7, %cst_2 [1] : vector<16x256xf32> to vector<16xf32>
    %9 = vector.shape_cast %8 : vector<16xf32> to vector<16x1xf32>
    %cst_3 = arith.constant 2.560000e+02 : f32
    %10 = vector.broadcast %cst_3 : f32 to vector<16x1xf32>
    %11 = arith.divf %9, %10 : vector<16x1xf32>
    %cst_4 = arith.constant 9.99999974E-6 : f32
    %12 = vector.broadcast %cst_4 : f32 to vector<16x1xf32>
    %13 = arith.addf %11, %12 : vector<16x1xf32>
    %14 = math.rsqrt %13 : vector<16x1xf32>
    %15 = vector.broadcast %14 : vector<16x1xf32> to vector<16x256xf32>
    %16 = arith.mulf %6, %15 : vector<16x256xf32>
    %c0_5 = arith.constant 0 : index
    %c0_6 = arith.constant 0 : index
    %17 = vector.load %arg2[%c0_5, %c0_6] : memref<1x256xf32, #tpu.memory_space<vmem>>, vector<1x256xf32>
    %18 = vector.broadcast %17 : vector<1x256xf32> to vector<16x256xf32>
    %19 = arith.mulf %16, %18 : vector<16x256xf32>
    %c0_7 = arith.constant 0 : index
    %c0_8 = arith.constant 0 : index
    %20 = vector.load %arg3[%c0_7, %c0_8] : memref<1x256xf32, #tpu.memory_space<vmem>>, vector<1x256xf32>
    %21 = vector.broadcast %20 : vector<1x256xf32> to vector<16x256xf32>
    %22 = arith.addf %19, %21 : vector<16x256xf32>
    %23 = arith.truncf %22 : vector<16x256xf32> to vector<16x256xbf16>
    %c0_9 = arith.constant 0 : index
    %c0_10 = arith.constant 0 : index
    %24 = vector.load %arg4[%c0_9, %c0_10] : memref<256x1024xbf16, #tpu.memory_space<vmem>>, vector<256x1024xbf16>
    %cst_11 = arith.constant dense<0.000000e+00> : vector<16x1024xf32>
    %25 = tpu.matmul %23, %24, %cst_11 {dimension_numbers = #tpu.dot_dimension_numbers<[1], [0], [0], [1], [0, 0, 1, 1], [], []>} : vector<16x256xbf16>, vector<256x1024xbf16>, vector<16x1024xf32> -> vector<16x1024xf32>
    %c0_12 = arith.constant 0 : index
    %c0_13 = arith.constant 0 : index
    %26 = vector.load %arg5[%c0_12, %c0_13] : memref<1x1024xf32, #tpu.memory_space<vmem>>, vector<1x1024xf32>
    %27 = vector.broadcast %26 : vector<1x1024xf32> to vector<16x1024xf32>
    %28 = arith.addf %25, %27 : vector<16x1024xf32>
    %29 = arith.mulf %28, %28 : vector<16x1024xf32>
    %30 = arith.mulf %28, %29 : vector<16x1024xf32>
    %cst_14 = arith.constant 4.471500e-02 : f32
    %31 = vector.broadcast %cst_14 : f32 to vector<16x1024xf32>
    %32 = arith.mulf %31, %30 : vector<16x1024xf32>
    %33 = arith.addf %28, %32 : vector<16x1024xf32>
    %cst_15 = arith.constant 0.797884583 : f32
    %34 = vector.broadcast %cst_15 : f32 to vector<16x1024xf32>
    %35 = arith.mulf %34, %33 : vector<16x1024xf32>
    %36 = math.tanh %35 : vector<16x1024xf32>
    %cst_16 = arith.constant 1.000000e+00 : f32
    %37 = vector.broadcast %cst_16 : f32 to vector<16x1024xf32>
    %38 = arith.addf %37, %36 : vector<16x1024xf32>
    %cst_17 = arith.constant 5.000000e-01 : f32
    %39 = vector.broadcast %cst_17 : f32 to vector<16x1024xf32>
    %40 = arith.mulf %39, %38 : vector<16x1024xf32>
    %41 = arith.mulf %28, %40 : vector<16x1024xf32>
    %42 = arith.truncf %41 : vector<16x1024xf32> to vector<16x1024xbf16>
    %c0_18 = arith.constant 0 : index
    %c0_19 = arith.constant 0 : index
    %43 = vector.load %arg6[%c0_18, %c0_19] : memref<1024x256xbf16, #tpu.memory_space<vmem>>, vector<1024x256xbf16>
    %cst_20 = arith.constant dense<0.000000e+00> : vector<16x256xf32>
    %44 = tpu.matmul %42, %43, %cst_20 {dimension_numbers = #tpu.dot_dimension_numbers<[1], [0], [0], [1], [0, 0, 1, 1], [], []>} : vector<16x1024xbf16>, vector<1024x256xbf16>, vector<16x256xf32> -> vector<16x256xf32>
    %c0_21 = arith.constant 0 : index
    %c0_22 = arith.constant 0 : index
    %45 = vector.load %arg7[%c0_21, %c0_22] : memref<1x256xf32, #tpu.memory_space<vmem>>, vector<1x256xf32>
    %46 = vector.broadcast %45 : vector<1x256xf32> to vector<16x256xf32>
    %47 = arith.addf %44, %46 : vector<16x256xf32>
    %48 = arith.addf %0, %47 : vector<16x256xf32>
    %c0_23 = arith.constant 0 : index
    %c0_24 = arith.constant 0 : index
    %49 = vector.load %arg8[%c0_23, %c0_24] : memref<16x256xf32, #tpu.memory_space<vmem>>, vector<16x256xf32>
    tpu.vector_store %arg8[%c0_23, %c0_24], %48 {strides = array<i32>} : memref<16x256xf32, #tpu.memory_space<vmem>>, vector<16x256xf32>,
    return
  }
  func.func @transform_0(%arg0: i32) -> (i32, i32) {
    %c0_i32 = arith.constant 0 : i32
    %c0_i32_0 = arith.constant 0 : i32
    return %arg0, %c0_i32 : i32, i32
  }
  func.func @transform_1(%arg0: i32) -> (i32, i32) {
    %c0_i32 = arith.constant 0 : i32
    %c0_i32_0 = arith.constant 0 : i32
    %c0_i32_1 = arith.constant 0 : i32
    return %c0_i32, %c0_i32_0 : i32, i32
  }
  func.func @transform_2(%arg0: i32) -> (i32, i32) {
    %c0_i32 = arith.constant 0 : i32
    %c0_i32_0 = arith.constant 0 : i32
    %c0_i32_1 = arith.constant 0 : i32
    return %c0_i32, %c0_i32_0 : i32, i32
  }
  func.func @transform_3(%arg0: i32) -> (i32, i32) {
    %c0_i32 = arith.constant 0 : i32
    %c0_i32_0 = arith.constant 0 : i32
    %c0_i32_1 = arith.constant 0 : i32
    return %c0_i32, %c0_i32_0 : i32, i32
  }
  func.func @transform_4(%arg0: i32) -> (i32, i32) {
    %c0_i32 = arith.constant 0 : i32
    %c0_i32_0 = arith.constant 0 : i32
    %c0_i32_1 = arith.constant 0 : i32
    return %c0_i32, %c0_i32_0 : i32, i32
  }
  func.func @transform_5(%arg0: i32) -> (i32, i32) {
    %c0_i32 = arith.constant 0 : i32
    %c0_i32_0 = arith.constant 0 : i32
    %c0_i32_1 = arith.constant 0 : i32
    return %c0_i32, %c0_i32_0 : i32, i32
  }
  func.func @transform_6(%arg0: i32) -> (i32, i32) {
    %c0_i32 = arith.constant 0 : i32
    %c0_i32_0 = arith.constant 0 : i32
    %c0_i32_1 = arith.constant 0 : i32
    return %c0_i32, %c0_i32_0 : i32, i32
  }
  func.func @transform_7(%arg0: i32) -> (i32, i32) {
    %c0_i32 = arith.constant 0 : i32
    %c0_i32_0 = arith.constant 0 : i32
    return %arg0, %c0_i32 : i32, i32
  }
}

</mosaic_0001>

<llo_original>
// kernel: attention_dense_block.1
$region0: #{attention_dense_block.1}
  #allocation0 [shape = 'u32[]', space=smem, size = 0x4, offset = 0x4, fixed_abs, tag = 'smem constant byte address 0x4 - core index']
  #allocation1 [shape = 'u32[144,128]{1,0:T(1,128)}', space=vmem, size = 0x12000, scoped, tag = 'internal scratch']
  %s0 = inlined_call_operand.hbm [shape: f32[16,256], index: 0, kind: input, shape index: {}]
  %s1 = inlined_call_operand.vmem [shape: f32[1,256], index: 1, kind: input, shape index: {}]
  %s2 = inlined_call_operand.vmem [shape: f32[1,256], index: 2, kind: input, shape index: {}]
  %s3 = inlined_call_operand.hbm [shape: bf16[256,1024], index: 3, kind: input, shape index: {}]
  %s4 = inlined_call_operand.hbm [shape: f32[1,1024], index: 4, kind: input, shape index: {}]
  %s5 = inlined_call_operand.hbm [shape: bf16[1024,256], index: 5, kind: input, shape index: {}]
  %s6 = inlined_call_operand.hbm [shape: f32[1,256], index: 6, kind: input, shape index: {}]
  %s7 = inlined_call_operand.hbm [shape: f32[16,256], index: 7, kind: output, shape index: {}]
  %s8 = sld [smem:[#allocation0]]
  $region58: #{attention_dense_block.1} parent=0
    _
  %s10 = ssub.s32 1, %s8
  %s11 = scalar_select 0, %s10, %s8
  $region1: #{attention_dense_block.1} parent=0
    #allocation2 [shape = 'u8[16384]{0}', space=vmem, size = 0x4000, scoped, tag = 'input window, operand 0, single buffered']
    #allocation3 [shape = 's32[1]{0}', space=sflag, size = 0x4, scoped, tag = 'scoped memory for attention_dense_block.1']
    #allocation4 [shape = 's32[1]{0}', space=sflag, size = 0x4, scoped, tag = 'scoped memory for attention_dense_block.1']
    #allocation5 [shape = 'u8[524288]{0}', space=vmem, size = 0x80000, scoped, tag = 'input window, operand 3, single buffered']
    #allocation6 [shape = 's32[1]{0}', space=sflag, size = 0x4, scoped, tag = 'scoped memory for attention_dense_block.1']
    #allocation7 [shape = 'u8[4096]{0}', space=vmem, size = 0x1000, scoped, tag = 'input window, operand 4, single buffered']
    #allocation8 [shape = 'u8[524288]{0}', space=vmem, size = 0x80000, scoped, tag = 'input window, operand 5, single buffered']
    #allocation9 [shape = 's32[1]{0}', space=sflag, size = 0x4, scoped, tag = 'scoped memory for attention_dense_block.1']
    #allocation10 [shape = 'u8[1024]{0}', space=vmem, size = 0x400, scoped, tag = 'input window, operand 6, single buffered']
    #allocation11 [shape = 'u8[16384]{0}', space=vmem, size = 0x4000, scoped, tag = 'output window, operand 0, single buffered']
    %12 = vsyncpa [#allocation3], 0
    %13 = vsyncpa [#allocation6], 0
    %14 = vsyncpa [#allocation9], 0
    %15 = vsyncpa [#allocation4], 0
    // Predicated region
    $region2: #{attention_dense_block.1} parent=1 // pred_check
      _
    $region3: #{attention_dense_block.1} parent=1 // pred_check_branch
      %17 = sbr.rel (0) target = $region5
    $region4: #{attention_dense_block.1} parent=1 // pred_region
      %s19 = ssub.s32 512, 512
      %20 = vsyncadd [#allocation3], %s19
      %s21 = sshll.u32 [#allocation2], 4
      %s22 = int_to_ptr.vmem [resolvable:$true] %s21
      %27 = dma.hbm_to_vmem [thread:$0]  %s0, 512, %s22, [#allocation3], 256, 256, 16
    $region5: #{attention_dense_block.1} parent=1 // pred_fallthru
      _
    // Predicated region
    $region6: #{attention_dense_block.1} parent=1 // pred_check
      _
    $region7: #{attention_dense_block.1} parent=1 // pred_check_branch
      %29 = sbr.rel (0) target = $region9
    $region8: #{attention_dense_block.1} parent=1 // pred_region
      _
    $region9: #{attention_dense_block.1} parent=1 // pred_fallthru
      _
    // Predicated region
    $region10: #{attention_dense_block.1} parent=1 // pred_check
      _
    $region11: #{attention_dense_block.1} parent=1 // pred_check_branch
      %31 = sbr.rel (0) target = $region13
    $region12: #{attention_dense_block.1} parent=1 // pred_region
      _
    $region13: #{attention_dense_block.1} parent=1 // pred_fallthru
      _
    // Predicated region
    $region14: #{attention_dense_block.1} parent=1 // pred_check
      _
    $region15: #{attention_dense_block.1} parent=1 // pred_check_branch
      %33 = sbr.rel (0) target = $region17
    $region16: #{attention_dense_block.1} parent=1 // pred_region
      %s35 = ssub.s32 16384, 16384
      %36 = vsyncadd [#allocation6], %s35
      %s37 = sshll.u32 [#allocation5], 4
      %s38 = int_to_ptr.vmem [resolvable:$true] %s37
      %43 = dma.hbm_to_vmem [thread:$0]  %s3, 16384, %s38, [#allocation6], 512, 512, 32
    $region17: #{attention_dense_block.1} parent=1 // pred_fallthru
      _
    // Predicated region
    $region18: #{attention_dense_block.1} parent=1 // pred_check
      _
    $region19: #{attention_dense_block.1} parent=1 // pred_check_branch
      %45 = sbr.rel (0) target = $region21
    $region20: #{attention_dense_block.1} parent=1 // pred_region
      %s47 = ssub.s32 128, 128
      %48 = vsyncadd [#allocation6], %s47
      %s50 = sshll.u32 [#allocation7], 4
      %s51 = int_to_ptr.vmem [resolvable:$true] %s50
      %53 = dma.hbm_to_vmem [thread:$0]  %s4, 128, %s51, [#allocation6]
    $region21: #{attention_dense_block.1} parent=1 // pred_fallthru
      _
    // Predicated region
    $region22: #{attention_dense_block.1} parent=1 // pred_check
      _
    $region23: #{attention_dense_block.1} parent=1 // pred_check_branch
      %55 = sbr.rel (0) target = $region25
    $region24: #{attention_dense_block.1} parent=1 // pred_region
      %s57 = ssub.s32 16384, 16384
      %58 = vsyncadd [#allocation9], %s57
      %s59 = sshll.u32 [#allocation8], 4
      %s60 = int_to_ptr.vmem [resolvable:$true] %s59
      %65 = dma.hbm_to_vmem [thread:$0]  %s5, 16384, %s60, [#allocation9], 128, 128, 8
    $region25: #{attention_dense_block.1} parent=1 // pred_fallthru
      _
    // Predicated region
    $region26: #{attention_dense_block.1} parent=1 // pred_check
      _
    $region27: #{attention_dense_block.1} parent=1 // pred_check_branch
      %67 = sbr.rel (0) target = $region29
    $region28: #{attention_dense_block.1} parent=1 // pred_region
      %s69 = ssub.s32 32, 32
      %70 = vsyncadd [#allocation9], %s69
      %s72 = sshll.u32 [#allocation10], 4
      %s73 = int_to_ptr.vmem [resolvable:$true] %s72
      %75 = dma.hbm_to_vmem [thread:$0]  %s6, 32, %s73, [#allocation9]
    $region29: #{attention_dense_block.1} parent=1 // pred_fallthru
      _
    // Predicated region
    $region30: #{attention_dense_block.1} parent=1 // pred_check
      _
    $region31: #{attention_dense_block.1} parent=1 // pred_check_branch
      %77 = sbr.rel (0) target = $region33
    $region32: #{attention_dense_block.1} parent=1 // pred_region
      %78 = dma.done [#allocation3], 512
    $region33: #{attention_dense_block.1} parent=1 // pred_fallthru
      _
    // Predicated region
    $region34: #{attention_dense_block.1} parent=1 // pred_check
      _
    $region35: #{attention_dense_block.1} parent=1 // pred_check_branch
      %80 = sbr.rel (0) target = $region37
    $region36: #{attention_dense_block.1} parent=1 // pred_region
      %81 = dma.done [#allocation6], 16384
    $region37: #{attention_dense_block.1} parent=1 // pred_fallthru
      _
    // Predicated region
    $region38: #{attention_dense_block.1} parent=1 // pred_check
      _
    $region39: #{attention_dense_block.1} parent=1 // pred_check_branch
      %83 = sbr.rel (0) target = $region41
    $region40: #{attention_dense_block.1} parent=1 // pred_region
      %84 = dma.done [#allocation6], 128
    $region41: #{attention_dense_block.1} parent=1 // pred_fallthru
      _
    // Predicated region
    $region42: #{attention_dense_block.1} parent=1 // pred_check
      _
    $region43: #{attention_dense_block.1} parent=1 // pred_check_branch
      %86 = sbr.rel (0) target = $region45
    $region44: #{attention_dense_block.1} parent=1 // pred_region
      %87 = dma.done [#allocation9], 16384
    $region45: #{attention_dense_block.1} parent=1 // pred_fallthru
      _
    // Predicated region
    $region46: #{attention_dense_block.1} parent=1 // pred_check
      _
    $region47: #{attention_dense_block.1} parent=1 // pred_check_branch
      %89 = sbr.rel (0) target = $region49
    $region48: #{attention_dense_block.1} parent=1 // pred_region
      %90 = dma.done [#allocation9], 32
    $region49: #{attention_dense_block.1} parent=1 // pred_fallthru
      _
    %v91 = vld [vmem:[#allocation2] sm:$0xff]
    %v92 = vld [vmem:[#allocation2 + $0x8] sm:$0xff]
    %v93 = vld [vmem:[#allocation2 + $0x10] sm:$0xff]
    %v94 = vld [vmem:[#allocation2 + $0x18] sm:$0xff]
    %v95 = vadd.f32 %v91, %v92
    %96 = vadd.xlane.f32.xlu0 %v95
    %v97 = vpop.xlane.xlu0 %96
    %v98 = vadd.f32 %v93, %v94
    %99 = vadd.xlane.f32.xlu0 %v98
    %v100 = vpop.xlane.xlu0 %99
    %v101 = vrcp.pop 256.0
    %v102 = vmul.f32 %v97, %v101
    %v103 = vmul.f32 %v100, %v101
    %v104 = vsub.f32 %v91, %v102
    %v105 = vsub.f32 %v92, %v102
    %v106 = vsub.f32 %v93, %v103
    %v107 = vsub.f32 %v94, %v103
    %v108 = vmul.f32 %v104, %v104
    %v109 = vmul.f32 %v105, %v105
    %v110 = vmul.f32 %v106, %v106
    %v111 = vmul.f32 %v107, %v107
    %v112 = vadd.f32 %v108, %v109
    %113 = vadd.xlane.f32.xlu0 %v112
    %v114 = vpop.xlane.xlu0 %113
    %v115 = vadd.f32 %v110, %v111
    %116 = vadd.xlane.f32.xlu0 %v115
    %v117 = vpop.xlane.xlu0 %116
    %v118 = vmul.f32 %v114, %v101
    %v119 = vmul.f32 %v117, %v101
    %v120 = vadd.f32 %v118, 1e-05
    %v121 = vadd.f32 %v119, 1e-05
    %v122 = vrsqrt.pop %v120
    %v123 = vrsqrt.pop %v121
    %v124 = vmul.f32 %v104, %v122
    %v125 = vmul.f32 %v105, %v122
    %v126 = vmul.f32 %v106, %v123
    %v127 = vmul.f32 %v107, %v123
    %v128 = vld [vmem:[%s1] sm:$0x3]
    %v130 = vlaneseq
    %v131 = vshrl.u32 %v130, 7
    %v132 = vsub.s32 0, %v131
    %v133 = vrot.slane %v128, %v132
    %v134 = vlaneseq
    %v135 = vshrl.u32 %v134, 7
    %v136 = vsub.s32 1, %v135
    %v137 = vrot.slane %v128, %v136
    %v140 = vmul.f32 %v124, %v133
    %v141 = vmul.f32 %v125, %v137
    %v142 = vmul.f32 %v126, %v133
    %v143 = vmul.f32 %v127, %v137
    %v144 = vld [vmem:[%s2] sm:$0x3]
    %v146 = vlaneseq
    %v147 = vshrl.u32 %v146, 7
    %v148 = vsub.s32 0, %v147
    %v149 = vrot.slane %v144, %v148
    %v150 = vlaneseq
    %v151 = vshrl.u32 %v150, 7
    %v152 = vsub.s32 1, %v151
    %v153 = vrot.slane %v144, %v152
    %v156 = vadd.f32 %v140, %v149
    %v157 = vadd.f32 %v141, %v153
    %v158 = vadd.f32 %v142, %v149
    %v159 = vadd.f32 %v143, %v153
    %v160 = vpack.c.bf16 %v158, %v156
    %v161 = vpack.c.bf16 %v159, %v157
    %v162 = vld [vmem:[#allocation5] sm:$0xff]
    %v163 = vld [vmem:[#allocation5 + $0x8] sm:$0xff]
    %v164 = vld [vmem:[#allocation5 + $0x10] sm:$0xff]
    %v165 = vld [vmem:[#allocation5 + $0x18] sm:$0xff]
    %v166 = vld [vmem:[#allocation5 + $0x20] sm:$0xff]
    %v167 = vld [vmem:[#allocation5 + $0x28] sm:$0xff]
    %v168 = vld [vmem:[#allocation5 + $0x30] sm:$0xff]
    %v169 = vld [vmem:[#allocation5 + $0x38] sm:$0xff]
    %v170 = vld [vmem:[#allocation5 + $0x40] sm:$0xff]
    %v171 = vld [vmem:[#allocation5 + $0x48] sm:$0xff]
    %v172 = vld [vmem:[#allocation5 + $0x50] sm:$0xff]
    %v173 = vld [vmem:[#allocation5 + $0x58] sm:$0xff]
    %v174 = vld [vmem:[#allocation5 + $0x60] sm:$0xff]
    %v175 = vld [vmem:[#allocation5 + $0x68] sm:$0xff]
    %v176 = vld [vmem:[#allocation5 + $0x70] sm:$0xff]
    %v177 = vld [vmem:[#allocation5 + $0x78] sm:$0xff]
    %v178 = vld [vmem:[#allocation5 + $0x80] sm:$0xff]
    %v179 = vld [vmem:[#allocation5 + $0x88] sm:$0xff]
    %v180 = vld [vmem:[#allocation5 + $0x90] sm:$0xff]
    %v181 = vld [vmem:[#allocation5 + $0x98] sm:$0xff]
    %v182 = vld [vmem:[#allocation5 + $0xa0] sm:$0xff]
    %v183 = vld [vmem:[#allocation5 + $0xa8] sm:$0xff]
    %v184 = vld [vmem:[#allocation5 + $0xb0] sm:$0xff]
    %v185 = vld [vmem:[#allocation5 + $0xb8] sm:$0xff]
    %v186 = vld [vmem:[#allocation5 + $0xc0] sm:$0xff]
    %v187 = vld [vmem:[#allocation5 + $0xc8] sm:$0xff]
    %v188 = vld [vmem:[#allocation5 + $0xd0] sm:$0xff]
    %v189 = vld [vmem:[#allocation5 + $0xd8] sm:$0xff]
    %v190 = vld [vmem:[#allocation5 + $0xe0] sm:$0xff]
    %v191 = vld [vmem:[#allocation5 + $0xe8] sm:$0xff]
    %v192 = vld [vmem:[#allocation5 + $0xf0] sm:$0xff]
    %v193 = vld [vmem:[#allocation5 + $0xf8] sm:$0xff]
    %v194 = vld [vmem:[#allocation5 + $0x100] sm:$0xff]
    %v195 = vld [vmem:[#allocation5 + $0x108] sm:$0xff]
    %v196 = vld [vmem:[#allocation5 + $0x110] sm:$0xff]
    %v197 = vld [vmem:[#allocation5 + $0x118] sm:$0xff]
    %v198 = vld [vmem:[#allocation5 + $0x120] sm:$0xff]
    %v199 = vld [vmem:[#allocation5 + $0x128] sm:$0xff]
    %v200 = vld [vmem:[#allocation5 + $0x130] sm:$0xff]
    %v201 = vld [vmem:[#allocation5 + $0x138] sm:$0xff]
    %v202 = vld [vmem:[#allocation5 + $0x140] sm:$0xff]
    %v203 = vld [vmem:[#allocation5 + $0x148] sm:$0xff]
    %v204 = vld [vmem:[#allocation5 + $0x150] sm:$0xff]
    %v205 = vld [vmem:[#allocation5 + $0x158] sm:$0xff]
    %v206 = vld [vmem:[#allocation5 + $0x160] sm:$0xff]
    %v207 = vld [vmem:[#allocation5 + $0x168] sm:$0xff]
    %v208 = vld [vmem:[#allocation5 + $0x170] sm:$0xff]
    %v209 = vld [vmem:[#allocation5 + $0x178] sm:$0xff]
    %v210 = vld [vmem:[#allocation5 + $0x180] sm:$0xff]
    %v211 = vld [vmem:[#allocation5 + $0x188] sm:$0xff]
    %v212 = vld [vmem:[#allocation5 + $0x190] sm:$0xff]
    %v213 = vld [vmem:[#allocation5 + $0x198] sm:$0xff]
    %v214 = vld [vmem:[#allocation5 + $0x1a0] sm:$0xff]
    %v215 = vld [vmem:[#allocation5 + $0x1a8] sm:$0xff]
    %v216 = vld [vmem:[#allocation5 + $0x1b0] sm:$0xff]
    %v217 = vld [vmem:[#allocation5 + $0x1b8] sm:$0xff]
    %v218 = vld [vmem:[#allocation5 + $0x1c0] sm:$0xff]
    %v219 = vld [vmem:[#allocation5 + $0x1c8] sm:$0xff]
    %v220 = vld [vmem:[#allocation5 + $0x1d0] sm:$0xff]
    %v221 = vld [vmem:[#allocation5 + $0x1d8] sm:$0xff]
    %v222 = vld [vmem:[#allocation5 + $0x1e0] sm:$0xff]
    %v223 = vld [vmem:[#allocation5 + $0x1e8] sm:$0xff]
    %v224 = vld [vmem:[#allocation5 + $0x1f0] sm:$0xff]
    %v225 = vld [vmem:[#allocation5 + $0x1f8] sm:$0xff]
    %v226 = vld [vmem:[#allocation5 + $0x200] sm:$0xff]
    %v227 = vld [vmem:[#allocation5 + $0x208] sm:$0xff]
    %v228 = vld [vmem:[#allocation5 + $0x210] sm:$0xff]
    %v229 = vld [vmem:[#allocation5 + $0x218] sm:$0xff]
    %v230 = vld [vmem:[#allocation5 + $0x220] sm:$0xff]
    %v231 = vld [vmem:[#allocation5 + $0x228] sm:$0xff]
    %v232 = vld [vmem:[#allocation5 + $0x230] sm:$0xff]
    %v233 = vld [vmem:[#allocation5 + $0x238] sm:$0xff]
    %v234 = vld [vmem:[#allocation5 + $0x240] sm:$0xff]
    %v235 = vld [vmem:[#allocation5 + $0x248] sm:$0xff]
    %v236 = vld [vmem:[#allocation5 + $0x250] sm:$0xff]
    %v237 = vld [vmem:[#allocation5 + $0x258] sm:$0xff]
    %v238 = vld [vmem:[#allocation5 + $0x260] sm:$0xff]
    %v239 = vld [vmem:[#allocation5 + $0x268] sm:$0xff]
    %v240 = vld [vmem:[#allocation5 + $0x270] sm:$0xff]
    %v241 = vld [vmem:[#allocation5 + $0x278] sm:$0xff]
    %v242 = vld [vmem:[#allocation5 + $0x280] sm:$0xff]
    %v243 = vld [vmem:[#allocation5 + $0x288] sm:$0xff]
    %v244 = vld [vmem:[#allocation5 + $0x290] sm:$0xff]
    %v245 = vld [vmem:[#allocation5 + $0x298] sm:$0xff]
    %v246 = vld [vmem:[#allocation5 + $0x2a0] sm:$0xff]
    %v247 = vld [vmem:[#allocation5 + $0x2a8] sm:$0xff]
    %v248 = vld [vmem:[#allocation5 + $0x2b0] sm:$0xff]
    %v249 = vld [vmem:[#allocation5 + $0x2b8] sm:$0xff]
    %v250 = vld [vmem:[#allocation5 + $0x2c0] sm:$0xff]
    %v251 = vld [vmem:[#allocation5 + $0x2c8] sm:$0xff]
    %v252 = vld [vmem:[#allocation5 + $0x2d0] sm:$0xff]
    %v253 = vld [vmem:[#allocation5 + $0x2d8] sm:$0xff]
    %v254 = vld [vmem:[#allocation5 + $0x2e0] sm:$0xff]
    %v255 = vld [vmem:[#allocation5 + $0x2e8] sm:$0xff]
    %v256 = vld [vmem:[#allocation5 + $0x2f0] sm:$0xff]
    %v257 = vld [vmem:[#allocation5 + $0x2f8] sm:$0xff]
    %v258 = vld [vmem:[#allocation5 + $0x300] sm:$0xff]
    %v259 = vld [vmem:[#allocation5 + $0x308] sm:$0xff]
    %v260 = vld [vmem:[#allocation5 + $0x310] sm:$0xff]
    %v261 = vld [vmem:[#allocation5 + $0x318] sm:$0xff]
    %v262 = vld [vmem:[#allocation5 + $0x320] sm:$0xff]
    %v263 = vld [vmem:[#allocation5 + $0x328] sm:$0xff]
    %v264 = vld [vmem:[#allocation5 + $0x330] sm:$0xff]
    %v265 = vld [vmem:[#allocation5 + $0x338] sm:$0xff]
    %v266 = vld [vmem:[#allocation5 + $0x340] sm:$0xff]
    %v267 = vld [vmem:[#allocation5 + $0x348] sm:$0xff]
    %v268 = vld [vmem:[#allocation5 + $0x350] sm:$0xff]
    %v269 = vld [vmem:[#allocation5 + $0x358] sm:$0xff]
    %v270 = vld [vmem:[#allocation5 + $0x360] sm:$0xff]
    %v271 = vld [vmem:[#allocation5 + $0x368] sm:$0xff]
    %v272 = vld [vmem:[#allocation5 + $0x370] sm:$0xff]
    %v273 = vld [vmem:[#allocation5 + $0x378] sm:$0xff]
    %v274 = vld [vmem:[#allocation5 + $0x380] sm:$0xff]
    %v275 = vld [vmem:[#allocation5 + $0x388] sm:$0xff]
    %v276 = vld [vmem:[#allocation5 + $0x390] sm:$0xff]
    %v277 = vld [vmem:[#allocation5 + $0x398] sm:$0xff]
    %v278 = vld [vmem:[#allocation5 + $0x3a0] sm:$0xff]
    %v279 = vld [vmem:[#allocation5 + $0x3a8] sm:$0xff]
    %v280 = vld [vmem:[#allocation5 + $0x3b0] sm:$0xff]
    %v281 = vld [vmem:[#allocation5 + $0x3b8] sm:$0xff]
    %v282 = vld [vmem:[#allocation5 + $0x3c0] sm:$0xff]
    %v283 = vld [vmem:[#allocation5 + $0x3c8] sm:$0xff]
    %v284 = vld [vmem:[#allocation5 + $0x3d0] sm:$0xff]
    %v285 = vld [vmem:[#allocation5 + $0x3d8] sm:$0xff]
    %v286 = vld [vmem:[#allocation5 + $0x3e0] sm:$0xff]
    %v287 = vld [vmem:[#allocation5 + $0x3e8] sm:$0xff]
    %v288 = vld [vmem:[#allocation5 + $0x3f0] sm:$0xff]
    %v289 = vld [vmem:[#allocation5 + $0x3f8] sm:$0xff]
    %v290 = vld [vmem:[#allocation7] sm:$0xff]
    %v292 = vlaneseq
    %v293 = vshrl.u32 %v292, 7
    %v294 = vsub.s32 0, %v293
    %v295 = vrot.slane %v290, %v294
    %v296 = vlaneseq
    %v297 = vshrl.u32 %v296, 7
    %v298 = vsub.s32 1, %v297
    %v299 = vrot.slane %v290, %v298
    %v300 = vlaneseq
    %v301 = vshrl.u32 %v300, 7
    %v302 = vsub.s32 2, %v301
    %v303 = vrot.slane %v290, %v302
    %v304 = vlaneseq
    %v305 = vshrl.u32 %v304, 7
    %v306 = vsub.s32 3, %v305
    %v307 = vrot.slane %v290, %v306
    %v308 = vlaneseq
    %v309 = vshrl.u32 %v308, 7
    %v310 = vsub.s32 4, %v309
    %v311 = vrot.slane %v290, %v310
    %v312 = vlaneseq
    %v313 = vshrl.u32 %v312, 7
    %v314 = vsub.s32 5, %v313
    %v315 = vrot.slane %v290, %v314
    %v316 = vlaneseq
    %v317 = vshrl.u32 %v316, 7
    %v318 = vsub.s32 6, %v317
    %v319 = vrot.slane %v290, %v318
    %v320 = vlaneseq
    %v321 = vshrl.u32 %v320, 7
    %v322 = vsub.s32 7, %v321
    %v323 = vrot.slane %v290, %v322
    %v460 = vunpack.c.l.b16 %v162
    %v461 = vunpack.c.h.b16 %v162
    %v462 = vunpack.c.l.b16 %v163
    %v463 = vunpack.c.h.b16 %v163
    %v464 = vunpack.c.l.b16 %v164
    %v465 = vunpack.c.h.b16 %v164
    %v466 = vunpack.c.l.b16 %v165
    %v467 = vunpack.c.h.b16 %v165
    %v468 = vunpack.c.l.b16 %v166
    %v469 = vunpack.c.h.b16 %v166
    %v470 = vunpack.c.l.b16 %v167
    %v471 = vunpack.c.h.b16 %v167
    %v472 = vunpack.c.l.b16 %v168
    %v473 = vunpack.c.h.b16 %v168
    %v474 = vunpack.c.l.b16 %v169
    %v475 = vunpack.c.h.b16 %v169
    %v476 = vunpack.c.l.b16 %v170
    %v477 = vunpack.c.h.b16 %v170
    %v478 = vunpack.c.l.b16 %v171
    %v479 = vunpack.c.h.b16 %v171
    %v480 = vunpack.c.l.b16 %v172
    %v481 = vunpack.c.h.b16 %v172
    %v482 = vunpack.c.l.b16 %v173
    %v483 = vunpack.c.h.b16 %v173
    %v484 = vunpack.c.l.b16 %v174
    %v485 = vunpack.c.h.b16 %v174
    %v486 = vunpack.c.l.b16 %v175
    %v487 = vunpack.c.h.b16 %v175
    %v488 = vunpack.c.l.b16 %v176
    %v489 = vunpack.c.h.b16 %v176
    %v490 = vunpack.c.l.b16 %v177
    %v491 = vunpack.c.h.b16 %v177
    %v492 = vunpack.c.l.b16 %v178
    %v493 = vunpack.c.h.b16 %v178
    %v494 = vunpack.c.l.b16 %v179
    %v495 = vunpack.c.h.b16 %v179
    %v496 = vunpack.c.l.b16 %v180
    %v497 = vunpack.c.h.b16 %v180
    %v498 = vunpack.c.l.b16 %v181
    %v499 = vunpack.c.h.b16 %v181
    %v500 = vunpack.c.l.b16 %v182
    %v501 = vunpack.c.h.b16 %v182
    %v502 = vunpack.c.l.b16 %v183
    %v503 = vunpack.c.h.b16 %v183
    %v504 = vunpack.c.l.b16 %v184
    %v505 = vunpack.c.h.b16 %v184
    %v506 = vunpack.c.l.b16 %v185
    %v507 = vunpack.c.h.b16 %v185
    %v508 = vunpack.c.l.b16 %v186
    %v509 = vunpack.c.h.b16 %v186
    %v510 = vunpack.c.l.b16 %v187
    %v511 = vunpack.c.h.b16 %v187
    %v512 = vunpack.c.l.b16 %v188
    %v513 = vunpack.c.h.b16 %v188
    %v514 = vunpack.c.l.b16 %v189
    %v515 = vunpack.c.h.b16 %v189
    %v516 = vunpack.c.l.b16 %v190
    %v517 = vunpack.c.h.b16 %v190
    %v518 = vunpack.c.l.b16 %v191
    %v519 = vunpack.c.h.b16 %v191
    %v520 = vunpack.c.l.b16 %v192
    %v521 = vunpack.c.h.b16 %v192
    %v522 = vunpack.c.l.b16 %v193
    %v523 = vunpack.c.h.b16 %v193
    %v524 = vunpack.c.l.b16 %v194
    %v525 = vunpack.c.h.b16 %v194
    %v526 = vunpack.c.l.b16 %v195
    %v527 = vunpack.c.h.b16 %v195
    %v528 = vunpack.c.l.b16 %v196
    %v529 = vunpack.c.h.b16 %v196
    %v530 = vunpack.c.l.b16 %v197
    %v531 = vunpack.c.h.b16 %v197
    %v532 = vunpack.c.l.b16 %v198
    %v533 = vunpack.c.h.b16 %v198
    %v534 = vunpack.c.l.b16 %v199
    %v535 = vunpack.c.h.b16 %v199
    %v536 = vunpack.c.l.b16 %v200
    %v537 = vunpack.c.h.b16 %v200
    %v538 = vunpack.c.l.b16 %v201
    %v539 = vunpack.c.h.b16 %v201
    %v540 = vunpack.c.l.b16 %v202
    %v541 = vunpack.c.h.b16 %v202
    %v542 = vunpack.c.l.b16 %v203
    %v543 = vunpack.c.h.b16 %v203
    %v544 = vunpack.c.l.b16 %v204
    %v545 = vunpack.c.h.b16 %v204
    %v546 = vunpack.c.l.b16 %v205
    %v547 = vunpack.c.h.b16 %v205
    %v548 = vunpack.c.l.b16 %v206
    %v549 = vunpack.c.h.b16 %v206
    %v550 = vunpack.c.l.b16 %v207
    %v551 = vunpack.c.h.b16 %v207
    %v552 = vunpack.c.l.b16 %v208
    %v553 = vunpack.c.h.b16 %v208
    %v554 = vunpack.c.l.b16 %v209
    %v555 = vunpack.c.h.b16 %v209
    %v556 = vunpack.c.l.b16 %v210
    %v557 = vunpack.c.h.b16 %v210
    %v558 = vunpack.c.l.b16 %v211
    %v559 = vunpack.c.h.b16 %v211
    %v560 = vunpack.c.l.b16 %v212
    %v561 = vunpack.c.h.b16 %v212
    %v562 = vunpack.c.l.b16 %v213
    %v563 = vunpack.c.h.b16 %v213
    %v564 = vunpack.c.l.b16 %v214
    %v565 = vunpack.c.h.b16 %v214
    %v566 = vunpack.c.l.b16 %v215
    %v567 = vunpack.c.h.b16 %v215
    %v568 = vunpack.c.l.b16 %v216
    %v569 = vunpack.c.h.b16 %v216
    %v570 = vunpack.c.l.b16 %v217
    %v571 = vunpack.c.h.b16 %v217
    %v572 = vunpack.c.l.b16 %v218
    %v573 = vunpack.c.h.b16 %v218
    %v574 = vunpack.c.l.b16 %v219
    %v575 = vunpack.c.h.b16 %v219
    %v576 = vunpack.c.l.b16 %v220
    %v577 = vunpack.c.h.b16 %v220
    %v578 = vunpack.c.l.b16 %v221
    %v579 = vunpack.c.h.b16 %v221
    %v580 = vunpack.c.l.b16 %v222
    %v581 = vunpack.c.h.b16 %v222
    %v582 = vunpack.c.l.b16 %v223
    %v583 = vunpack.c.h.b16 %v223
    %v584 = vunpack.c.l.b16 %v224
    %v585 = vunpack.c.h.b16 %v224
    %v586 = vunpack.c.l.b16 %v225
    %v587 = vunpack.c.h.b16 %v225
    %v588 = vunpack.c.l.b16 %v226
    %v589 = vunpack.c.h.b16 %v226
    %v590 = vunpack.c.l.b16 %v227
    %v591 = vunpack.c.h.b16 %v227
    %v592 = vunpack.c.l.b16 %v228
    %v593 = vunpack.c.h.b16 %v228
    %v594 = vunpack.c.l.b16 %v229
    %v595 = vunpack.c.h.b16 %v229
    %v596 = vunpack.c.l.b16 %v230
    %v597 = vunpack.c.h.b16 %v230
    %v598 = vunpack.c.l.b16 %v231
    %v599 = vunpack.c.h.b16 %v231
    %v600 = vunpack.c.l.b16 %v232
    %v601 = vunpack.c.h.b16 %v232
    %v602 = vunpack.c.l.b16 %v233
    %v603 = vunpack.c.h.b16 %v233
    %v604 = vunpack.c.l.b16 %v234
    %v605 = vunpack.c.h.b16 %v234
    %v606 = vunpack.c.l.b16 %v235
    %v607 = vunpack.c.h.b16 %v235
    %v608 = vunpack.c.l.b16 %v236
    %v609 = vunpack.c.h.b16 %v236
    %v610 = vunpack.c.l.b16 %v237
    %v611 = vunpack.c.h.b16 %v237
    %v612 = vunpack.c.l.b16 %v238
    %v613 = vunpack.c.h.b16 %v238
    %v614 = vunpack.c.l.b16 %v239
    %v615 = vunpack.c.h.b16 %v239
    %v616 = vunpack.c.l.b16 %v240
    %v617 = vunpack.c.h.b16 %v240
    %v618 = vunpack.c.l.b16 %v241
    %v619 = vunpack.c.h.b16 %v241
    %v620 = vunpack.c.l.b16 %v242
    %v621 = vunpack.c.h.b16 %v242
    %v622 = vunpack.c.l.b16 %v243
    %v623 = vunpack.c.h.b16 %v243
    %v624 = vunpack.c.l.b16 %v244
    %v625 = vunpack.c.h.b16 %v244
    %v626 = vunpack.c.l.b16 %v245
    %v627 = vunpack.c.h.b16 %v245
    %v628 = vunpack.c.l.b16 %v246
    %v629 = vunpack.c.h.b16 %v246
    %v630 = vunpack.c.l.b16 %v247
    %v631 = vunpack.c.h.b16 %v247
    %v632 = vunpack.c.l.b16 %v248
    %v633 = vunpack.c.h.b16 %v248
    %v634 = vunpack.c.l.b16 %v249
    %v635 = vunpack.c.h.b16 %v249
    %v636 = vunpack.c.l.b16 %v250
    %v637 = vunpack.c.h.b16 %v250
    %v638 = vunpack.c.l.b16 %v251
    %v639 = vunpack.c.h.b16 %v251
    %v640 = vunpack.c.l.b16 %v252
    %v641 = vunpack.c.h.b16 %v252
    %v642 = vunpack.c.l.b16 %v253
    %v643 = vunpack.c.h.b16 %v253
    %v644 = vunpack.c.l.b16 %v254
    %v645 = vunpack.c.h.b16 %v254
    %v646 = vunpack.c.l.b16 %v255
    %v647 = vunpack.c.h.b16 %v255
    %v648 = vunpack.c.l.b16 %v256
    %v649 = vunpack.c.h.b16 %v256
    %v650 = vunpack.c.l.b16 %v257
    %v651 = vunpack.c.h.b16 %v257
    %v652 = vunpack.c.l.b16 %v258
    %v653 = vunpack.c.h.b16 %v258
    %v654 = vunpack.c.l.b16 %v259
    %v655 = vunpack.c.h.b16 %v259
    %v656 = vunpack.c.l.b16 %v260
    %v657 = vunpack.c.h.b16 %v260
    %v658 = vunpack.c.l.b16 %v261
    %v659 = vunpack.c.h.b16 %v261
    %v660 = vunpack.c.l.b16 %v262
    %v661 = vunpack.c.h.b16 %v262
    %v662 = vunpack.c.l.b16 %v263
    %v663 = vunpack.c.h.b16 %v263
    %v664 = vunpack.c.l.b16 %v264
    %v665 = vunpack.c.h.b16 %v264
    %v666 = vunpack.c.l.b16 %v265
    %v667 = vunpack.c.h.b16 %v265
    %v668 = vunpack.c.l.b16 %v266
    %v669 = vunpack.c.h.b16 %v266
    %v670 = vunpack.c.l.b16 %v267
    %v671 = vunpack.c.h.b16 %v267
    %v672 = vunpack.c.l.b16 %v268
    %v673 = vunpack.c.h.b16 %v268
    %v674 = vunpack.c.l.b16 %v269
    %v675 = vunpack.c.h.b16 %v269
    %v676 = vunpack.c.l.b16 %v270
    %v677 = vunpack.c.h.b16 %v270
    %v678 = vunpack.c.l.b16 %v271
    %v679 = vunpack.c.h.b16 %v271
    %v680 = vunpack.c.l.b16 %v272
    %v681 = vunpack.c.h.b16 %v272
    %v682 = vunpack.c.l.b16 %v273
    %v683 = vunpack.c.h.b16 %v273
    %v684 = vunpack.c.l.b16 %v274
    %v685 = vunpack.c.h.b16 %v274
    %v686 = vunpack.c.l.b16 %v275
    %v687 = vunpack.c.h.b16 %v275
    %v688 = vunpack.c.l.b16 %v276
    %v689 = vunpack.c.h.b16 %v276
    %v690 = vunpack.c.l.b16 %v277
    %v691 = vunpack.c.h.b16 %v277
    %v692 = vunpack.c.l.b16 %v278
    %v693 = vunpack.c.h.b16 %v278
    %v694 = vunpack.c.l.b16 %v279
    %v695 = vunpack.c.h.b16 %v279
    %v696 = vunpack.c.l.b16 %v280
    %v697 = vunpack.c.h.b16 %v280
    %v698 = vunpack.c.l.b16 %v281
    %v699 = vunpack.c.h.b16 %v281
    %v700 = vunpack.c.l.b16 %v282
    %v701 = vunpack.c.h.b16 %v282
    %v702 = vunpack.c.l.b16 %v283
    %v703 = vunpack.c.h.b16 %v283
    %v704 = vunpack.c.l.b16 %v284
    %v705 = vunpack.c.h.b16 %v284
    %v706 = vunpack.c.l.b16 %v285
    %v707 = vunpack.c.h.b16 %v285
    %v708 = vunpack.c.l.b16 %v286
    %v709 = vunpack.c.h.b16 %v286
    %v710 = vunpack.c.l.b16 %v287
    %v711 = vunpack.c.h.b16 %v287
    %v712 = vunpack.c.l.b16 %v288
    %v713 = vunpack.c.h.b16 %v288
    %v714 = vunpack.c.l.b16 %v289
    %v715 = vunpack.c.h.b16 %v289
    %v716 = vpack.c.b16 %v468, %v460
    %v717 = vpack.c.b16 %v469, %v461
    %v718 = vpack.c.b16 %v470, %v462
    %v719 = vpack.c.b16 %v471, %v463
    %v720 = vpack.c.b16 %v472, %v464
    %v721 = vpack.c.b16 %v473, %v465
    %v722 = vpack.c.b16 %v474, %v466
    %v723 = vpack.c.b16 %v475, %v467
    %v724 = vpack.c.b16 %v484, %v476
    %v725 = vpack.c.b16 %v485, %v477
    %v726 = vpack.c.b16 %v486, %v478
    %v727 = vpack.c.b16 %v487, %v479
    %v728 = vpack.c.b16 %v488, %v480
    %v729 = vpack.c.b16 %v489, %v481
    %v730 = vpack.c.b16 %v490, %v482
    %v731 = vpack.c.b16 %v491, %v483
    %v732 = vpack.c.b16 %v500, %v492
    %v733 = vpack.c.b16 %v501, %v493
    %v734 = vpack.c.b16 %v502, %v494
    %v735 = vpack.c.b16 %v503, %v495
    %v736 = vpack.c.b16 %v504, %v496
    %v737 = vpack.c.b16 %v505, %v497
    %v738 = vpack.c.b16 %v506, %v498
    %v739 = vpack.c.b16 %v507, %v499
    %v740 = vpack.c.b16 %v516, %v508
    %v741 = vpack.c.b16 %v517, %v509
    %v742 = vpack.c.b16 %v518, %v510
    %v743 = vpack.c.b16 %v519, %v511
    %v744 = vpack.c.b16 %v520, %v512
    %v745 = vpack.c.b16 %v521, %v513
    %v746 = vpack.c.b16 %v522, %v514
    %v747 = vpack.c.b16 %v523, %v515
    %v748 = vpack.c.b16 %v532, %v524
    %v749 = vpack.c.b16 %v533, %v525
    %v750 = vpack.c.b16 %v534, %v526
    %v751 = vpack.c.b16 %v535, %v527
    %v752 = vpack.c.b16 %v536, %v528
    %v753 = vpack.c.b16 %v537, %v529
    %v754 = vpack.c.b16 %v538, %v530
    %v755 = vpack.c.b16 %v539, %v531
    %v756 = vpack.c.b16 %v548, %v540
    %v757 = vpack.c.b16 %v549, %v541
    %v758 = vpack.c.b16 %v550, %v542
    %v759 = vpack.c.b16 %v551, %v543
    %v760 = vpack.c.b16 %v552, %v544
    %v761 = vpack.c.b16 %v553, %v545
    %v762 = vpack.c.b16 %v554, %v546
    %v763 = vpack.c.b16 %v555, %v547
    %v764 = vpack.c.b16 %v564, %v556
    %v765 = vpack.c.b16 %v565, %v557
    %v766 = vpack.c.b16 %v566, %v558
    %v767 = vpack.c.b16 %v567, %v559
    %v768 = vpack.c.b16 %v568, %v560
    %v769 = vpack.c.b16 %v569, %v561
    %v770 = vpack.c.b16 %v570, %v562
    %v771 = vpack.c.b16 %v571, %v563
    %v772 = vpack.c.b16 %v580, %v572
    %v773 = vpack.c.b16 %v581, %v573
    %v774 = vpack.c.b16 %v582, %v574
    %v775 = vpack.c.b16 %v583, %v575
    %v776 = vpack.c.b16 %v584, %v576
    %v777 = vpack.c.b16 %v585, %v577
    %v778 = vpack.c.b16 %v586, %v578
    %v779 = vpack.c.b16 %v587, %v579
    %v780 = vpack.c.b16 %v596, %v588
    %v781 = vpack.c.b16 %v597, %v589
    %v782 = vpack.c.b16 %v598, %v590
    %v783 = vpack.c.b16 %v599, %v591
    %v784 = vpack.c.b16 %v600, %v592
    %v785 = vpack.c.b16 %v601, %v593
    %v786 = vpack.c.b16 %v602, %v594
    %v787 = vpack.c.b16 %v603, %v595
    %v788 = vpack.c.b16 %v612, %v604
    %v789 = vpack.c.b16 %v613, %v605
    %v790 = vpack.c.b16 %v614, %v606
    %v791 = vpack.c.b16 %v615, %v607
    %v792 = vpack.c.b16 %v616, %v608
    %v793 = vpack.c.b16 %v617, %v609
    %v794 = vpack.c.b16 %v618, %v610
    %v795 = vpack.c.b16 %v619, %v611
    %v796 = vpack.c.b16 %v628, %v620
    %v797 = vpack.c.b16 %v629, %v621
    %v798 = vpack.c.b16 %v630, %v622
    %v799 = vpack.c.b16 %v631, %v623
    %v800 = vpack.c.b16 %v632, %v624
    %v801 = vpack.c.b16 %v633, %v625
    %v802 = vpack.c.b16 %v634, %v626
    %v803 = vpack.c.b16 %v635, %v627
    %v804 = vpack.c.b16 %v644, %v636
    %v805 = vpack.c.b16 %v645, %v637
    %v806 = vpack.c.b16 %v646, %v638
    %v807 = vpack.c.b16 %v647, %v639
    %v808 = vpack.c.b16 %v648, %v640
    %v809 = vpack.c.b16 %v649, %v641
    %v810 = vpack.c.b16 %v650, %v642
    %v811 = vpack.c.b16 %v651, %v643
    %v812 = vpack.c.b16 %v660, %v652
    %v813 = vpack.c.b16 %v661, %v653
    %v814 = vpack.c.b16 %v662, %v654
    %v815 = vpack.c.b16 %v663, %v655
    %v816 = vpack.c.b16 %v664, %v656
    %v817 = vpack.c.b16 %v665, %v657
    %v818 = vpack.c.b16 %v666, %v658
    %v819 = vpack.c.b16 %v667, %v659
    %v820 = vpack.c.b16 %v676, %v668
    %v821 = vpack.c.b16 %v677, %v669
    %v822 = vpack.c.b16 %v678, %v670
    %v823 = vpack.c.b16 %v679, %v671
    %v824 = vpack.c.b16 %v680, %v672
    %v825 = vpack.c.b16 %v681, %v673
    %v826 = vpack.c.b16 %v682, %v674
    %v827 = vpack.c.b16 %v683, %v675
    %v828 = vpack.c.b16 %v692, %v684
    %v829 = vpack.c.b16 %v693, %v685
    %v830 = vpack.c.b16 %v694, %v686
    %v831 = vpack.c.b16 %v695, %v687
    %v832 = vpack.c.b16 %v696, %v688
    %v833 = vpack.c.b16 %v697, %v689
    %v834 = vpack.c.b16 %v698, %v690
    %v835 = vpack.c.b16 %v699, %v691
    %v836 = vpack.c.b16 %v708, %v700
    %v837 = vpack.c.b16 %v709, %v701
    %v838 = vpack.c.b16 %v710, %v702
    %v839 = vpack.c.b16 %v711, %v703
    %v840 = vpack.c.b16 %v712, %v704
    %v841 = vpack.c.b16 %v713, %v705
    %v842 = vpack.c.b16 %v714, %v706
    %v843 = vpack.c.b16 %v715, %v707
    %972 = vmatprep.subr.bf16.mxu0 %v773
    %973 = vmatpush1.bf16.msra.mxu0 %v772
    %974 = vmatprep.subr.bf16.mxu0 %v765
    %975 = vmatpush1.bf16.msra.mxu0 %v764
    %976 = vmatprep.subr.bf16.mxu0 %v757
    %977 = vmatpush1.bf16.msra.mxu0 %v756
    %978 = vmatprep.subr.bf16.mxu0 %v749
    %979 = vmatpush1.bf16.msra.mxu0 %v748
    %980 = vmatprep.subr.bf16.mxu0 %v741
    %981 = vmatpush1.bf16.msra.mxu0 %v740
    %982 = vmatprep.subr.bf16.mxu0 %v733
    %983 = vmatpush1.bf16.msra.mxu0 %v732
    %984 = vmatprep.subr.bf16.mxu0 %v725
    %985 = vmatpush1.bf16.msra.mxu0 %v724
    %986 = vmatprep.subr.bf16.mxu0 %v717
    %987 = vmatpush1.bf16.msra.mxu0 %v716
    %988 = vmatprep.subr.bf16.mxu0 %v837
    %989 = vmatpush2.bf16.msra.mxu0 %v836
    %990 = vmatprep.subr.bf16.mxu0 %v829
    %991 = vmatpush2.bf16.msra.mxu0 %v828
    %992 = vmatprep.subr.bf16.mxu0 %v821
    %993 = vmatpush2.bf16.msra.mxu0 %v820
    %994 = vmatprep.subr.bf16.mxu0 %v813
    %995 = vmatpush2.bf16.msra.mxu0 %v812
    %996 = vmatprep.subr.bf16.mxu0 %v805
    %997 = vmatpush2.bf16.msra.mxu0 %v804
    %998 = vmatprep.subr.bf16.mxu0 %v797
    %999 = vmatpush2.bf16.msra.mxu0 %v796
    %1000 = vmatprep.subr.bf16.mxu0 %v789
    %1001 = vmatpush2.bf16.msra.mxu0 %v788
    %1002 = vmatprep.subr.bf16.mxu0 %v781
    %1003 = vmatpush2.bf16.msra.mxu0 %v780
    %1004 = vmatprep.mubr.bf16.mxu0 %v161
    %1005 = vmatmul.mubr.bf16.gmra.mxu0 %v160
    %v1006 = vpop.f32.mrf.mxu0
    %v1007 = vadd.f32 %v295, %v1006
    %v1008 = vpop.f32.mrf.mxu0
    %v1009 = vadd.f32 %v299, %v1008
    %v1010 = vpop.f32.mrf.mxu0
    %v1011 = vadd.f32 %v295, %v1010
    %v1012 = vpop.f32.mrf.mxu0
    %v1013 = vadd.f32 %v299, %v1012
    %1014 = vdwg.mxu0
    %1015 = vmatprep.subr.bf16.mxu0 %v775
    %1016 = vmatpush1.bf16.msra.mxu0 %v774
    %1017 = vmatprep.subr.bf16.mxu0 %v767
    %1018 = vmatpush1.bf16.msra.mxu0 %v766
    %1019 = vmatprep.subr.bf16.mxu0 %v759
    %1020 = vmatpush1.bf16.msra.mxu0 %v758
    %1021 = vmatprep.subr.bf16.mxu0 %v751
    %1022 = vmatpush1.bf16.msra.mxu0 %v750
    %1023 = vmatprep.subr.bf16.mxu0 %v743
    %1024 = vmatpush1.bf16.msra.mxu0 %v742
    %1025 = vmatprep.subr.bf16.mxu0 %v735
    %1026 = vmatpush1.bf16.msra.mxu0 %v734
    %1027 = vmatprep.subr.bf16.mxu0 %v727
    %1028 = vmatpush1.bf16.msra.mxu0 %v726
    %1029 = vmatprep.subr.bf16.mxu0 %v719
    %1030 = vmatpush1.bf16.msra.mxu0 %v718
    %1031 = vmatprep.subr.bf16.mxu0 %v839
    %1032 = vmatpush2.bf16.msra.mxu0 %v838
    %1033 = vmatprep.subr.bf16.mxu0 %v831
    %1034 = vmatpush2.bf16.msra.mxu0 %v830
    %1035 = vmatprep.subr.bf16.mxu0 %v823
    %1036 = vmatpush2.bf16.msra.mxu0 %v822
    %1037 = vmatprep.subr.bf16.mxu0 %v815
    %1038 = vmatpush2.bf16.msra.mxu0 %v814
    %1039 = vmatprep.subr.bf16.mxu0 %v807
    %1040 = vmatpush2.bf16.msra.mxu0 %v806
    %1041 = vmatprep.subr.bf16.mxu0 %v799
    %1042 = vmatpush2.bf16.msra.mxu0 %v798
    %1043 = vmatprep.subr.bf16.mxu0 %v791
    %1044 = vmatpush2.bf16.msra.mxu0 %v790
    %1045 = vmatprep.subr.bf16.mxu0 %v783
    %1046 = vmatpush2.bf16.msra.mxu0 %v782
    %1047 = vmatprep.mubr.bf16.mxu0 %v161
    %1048 = vmatmul.mubr.bf16.gmra.mxu0 %v160
    %v1049 = vpop.f32.mrf.mxu0
    %v1050 = vadd.f32 %v303, %v1049
    %v1051 = vpop.f32.mrf.mxu0
    %v1052 = vadd.f32 %v307, %v1051
    %v1053 = vpop.f32.mrf.mxu0
    %v1054 = vadd.f32 %v303, %v1053
    %v1055 = vpop.f32.mrf.mxu0
    %v1056 = vadd.f32 %v307, %v1055
    %1057 = vdwg.mxu0
    %1058 = vmatprep.subr.bf16.mxu0 %v777
    %1059 = vmatpush1.bf16.msra.mxu0 %v776
    %1060 = vmatprep.subr.bf16.mxu0 %v769
    %1061 = vmatpush1.bf16.msra.mxu0 %v768
    %1062 = vmatprep.subr.bf16.mxu0 %v761
    %1063 = vmatpush1.bf16.msra.mxu0 %v760
    %1064 = vmatprep.subr.bf16.mxu0 %v753
    %1065 = vmatpush1.bf16.msra.mxu0 %v752
    %1066 = vmatprep.subr.bf16.mxu0 %v745
    %1067 = vmatpush1.bf16.msra.mxu0 %v744
    %1068 = vmatprep.subr.bf16.mxu0 %v737
    %1069 = vmatpush1.bf16.msra.mxu0 %v736
    %1070 = vmatprep.subr.bf16.mxu0 %v729
    %1071 = vmatpush1.bf16.msra.mxu0 %v728
    %1072 = vmatprep.subr.bf16.mxu0 %v721
    %1073 = vmatpush1.bf16.msra.mxu0 %v720
    %1074 = vmatprep.subr.bf16.mxu0 %v841
    %1075 = vmatpush2.bf16.msra.mxu0 %v840
    %1076 = vmatprep.subr.bf16.mxu0 %v833
    %1077 = vmatpush2.bf16.msra.mxu0 %v832
    %1078 = vmatprep.subr.bf16.mxu0 %v825
    %1079 = vmatpush2.bf16.msra.mxu0 %v824
    %1080 = vmatprep.subr.bf16.mxu0 %v817
    %1081 = vmatpush2.bf16.msra.mxu0 %v816
    %1082 = vmatprep.subr.bf16.mxu0 %v809
    %1083 = vmatpush2.bf16.msra.mxu0 %v808
    %1084 = vmatprep.subr.bf16.mxu0 %v801
    %1085 = vmatpush2.bf16.msra.mxu0 %v800
    %1086 = vmatprep.subr.bf16.mxu0 %v793
    %1087 = vmatpush2.bf16.msra.mxu0 %v792
    %1088 = vmatprep.subr.bf16.mxu0 %v785
    %1089 = vmatpush2.bf16.msra.mxu0 %v784
    %1090 = vmatprep.mubr.bf16.mxu0 %v161
    %1091 = vmatmul.mubr.bf16.gmra.mxu0 %v160
    %v1092 = vpop.f32.mrf.mxu0
    %v1093 = vadd.f32 %v311, %v1092
    %v1094 = vpop.f32.mrf.mxu0
    %v1095 = vadd.f32 %v315, %v1094
    %v1096 = vpop.f32.mrf.mxu0
    %v1097 = vadd.f32 %v311, %v1096
    %v1098 = vpop.f32.mrf.mxu0
    %v1099 = vadd.f32 %v315, %v1098
    %1100 = vdwg.mxu0
    %1101 = vmatprep.subr.bf16.mxu0 %v779
    %1102 = vmatpush1.bf16.msra.mxu0 %v778
    %1103 = vmatprep.subr.bf16.mxu0 %v771
    %1104 = vmatpush1.bf16.msra.mxu0 %v770
    %1105 = vmatprep.subr.bf16.mxu0 %v763
    %1106 = vmatpush1.bf16.msra.mxu0 %v762
    %1107 = vmatprep.subr.bf16.mxu0 %v755
    %1108 = vmatpush1.bf16.msra.mxu0 %v754
    %1109 = vmatprep.subr.bf16.mxu0 %v747
    %1110 = vmatpush1.bf16.msra.mxu0 %v746
    %1111 = vmatprep.subr.bf16.mxu0 %v739
    %1112 = vmatpush1.bf16.msra.mxu0 %v738
    %1113 = vmatprep.subr.bf16.mxu0 %v731
    %1114 = vmatpush1.bf16.msra.mxu0 %v730
    %1115 = vmatprep.subr.bf16.mxu0 %v723
    %1116 = vmatpush1.bf16.msra.mxu0 %v722
    %1117 = vmatprep.subr.bf16.mxu0 %v843
    %1118 = vmatpush2.bf16.msra.mxu0 %v842
    %1119 = vmatprep.subr.bf16.mxu0 %v835
    %1120 = vmatpush2.bf16.msra.mxu0 %v834
    %1121 = vmatprep.subr.bf16.mxu0 %v827
    %1122 = vmatpush2.bf16.msra.mxu0 %v826
    %1123 = vmatprep.subr.bf16.mxu0 %v819
    %1124 = vmatpush2.bf16.msra.mxu0 %v818
    %1125 = vmatprep.subr.bf16.mxu0 %v811
    %1126 = vmatpush2.bf16.msra.mxu0 %v810
    %1127 = vmatprep.subr.bf16.mxu0 %v803
    %1128 = vmatpush2.bf16.msra.mxu0 %v802
    %1129 = vmatprep.subr.bf16.mxu0 %v795
    %1130 = vmatpush2.bf16.msra.mxu0 %v794
    %1131 = vmatprep.subr.bf16.mxu0 %v787
    %1132 = vmatpush2.bf16.msra.mxu0 %v786
    %1133 = vmatprep.mubr.bf16.mxu0 %v161
    %1134 = vmatmul.mubr.bf16.gmra.mxu0 %v160
    %v1135 = vpop.f32.mrf.mxu0
    %v1136 = vadd.f32 %v319, %v1135
    %v1137 = vpop.f32.mrf.mxu0
    %v1138 = vadd.f32 %v323, %v1137
    %v1139 = vpop.f32.mrf.mxu0
    %v1140 = vadd.f32 %v319, %v1139
    %v1141 = vpop.f32.mrf.mxu0
    %v1142 = vadd.f32 %v323, %v1141
    %1143 = vdwg.mxu0
    %v1144 = vmul.f32 %v1007, %v1007
    %v1145 = vmul.f32 %v1009, %v1009
    %v1146 = vmul.f32 %v1050, %v1050
    %v1147 = vmul.f32 %v1052, %v1052
    %v1148 = vmul.f32 %v1093, %v1093
    %v1149 = vmul.f32 %v1095, %v1095
    %v1150 = vmul.f32 %v1136, %v1136
    %v1151 = vmul.f32 %v1138, %v1138
    %v1152 = vmul.f32 %v1011, %v1011
    %v1153 = vmul.f32 %v1013, %v1013
    %v1154 = vmul.f32 %v1054, %v1054
    %v1155 = vmul.f32 %v1056, %v1056
    %v1156 = vmul.f32 %v1097, %v1097
    %v1157 = vmul.f32 %v1099, %v1099
    %v1158 = vmul.f32 %v1140, %v1140
    %v1159 = vmul.f32 %v1142, %v1142
    %v1160 = vmul.f32 %v1007, %v1144
    %v1161 = vmul.f32 %v1009, %v1145
    %v1162 = vmul.f32 %v1050, %v1146
    %v1163 = vmul.f32 %v1052, %v1147
    %v1164 = vmul.f32 %v1093, %v1148
    %v1165 = vmul.f32 %v1095, %v1149
    %v1166 = vmul.f32 %v1136, %v1150
    %v1167 = vmul.f32 %v1138, %v1151
    %v1168 = vmul.f32 %v1011, %v1152
    %v1169 = vmul.f32 %v1013, %v1153
    %v1170 = vmul.f32 %v1054, %v1154
    %v1171 = vmul.f32 %v1056, %v1155
    %v1172 = vmul.f32 %v1097, %v1156
    %v1173 = vmul.f32 %v1099, %v1157
    %v1174 = vmul.f32 %v1140, %v1158
    %v1175 = vmul.f32 %v1142, %v1159
    %v1176 = vmul.f32 %v1160, 0.044715
    %v1177 = vmul.f32 %v1161, 0.044715
    %v1178 = vmul.f32 %v1162, 0.044715
    %v1179 = vmul.f32 %v1163, 0.044715
    %v1180 = vmul.f32 %v1164, 0.044715
    %v1181 = vmul.f32 %v1165, 0.044715
    %v1182 = vmul.f32 %v1166, 0.044715
    %v1183 = vmul.f32 %v1167, 0.044715
    %v1184 = vmul.f32 %v1168, 0.044715
    %v1185 = vmul.f32 %v1169, 0.044715
    %v1186 = vmul.f32 %v1170, 0.044715
    %v1187 = vmul.f32 %v1171, 0.044715
    %v1188 = vmul.f32 %v1172, 0.044715
    %v1189 = vmul.f32 %v1173, 0.044715
    %v1190 = vmul.f32 %v1174, 0.044715
    %v1191 = vmul.f32 %v1175, 0.044715
    %v1192 = vadd.f32 %v1007, %v1176
    %v1193 = vadd.f32 %v1009, %v1177
    %v1194 = vadd.f32 %v1050, %v1178
    %v1195 = vadd.f32 %v1052, %v1179
    %v1196 = vadd.f32 %v1093, %v1180
    %v1197 = vadd.f32 %v1095, %v1181
    %v1198 = vadd.f32 %v1136, %v1182
    %v1199 = vadd.f32 %v1138, %v1183
    %v1200 = vadd.f32 %v1011, %v1184
    %v1201 = vadd.f32 %v1013, %v1185
    %v1202 = vadd.f32 %v1054, %v1186
    %v1203 = vadd.f32 %v1056, %v1187
    %v1204 = vadd.f32 %v1097, %v1188
    %v1205 = vadd.f32 %v1099, %v1189
    %v1206 = vadd.f32 %v1140, %v1190
    %v1207 = vadd.f32 %v1142, %v1191
    %v1208 = vmul.f32 %v1192, 0.7978846
    %v1209 = vmul.f32 %v1193, 0.7978846
    %v1210 = vmul.f32 %v1194, 0.7978846
    %v1211 = vmul.f32 %v1195, 0.7978846
    %v1212 = vmul.f32 %v1196, 0.7978846
    %v1213 = vmul.f32 %v1197, 0.7978846
    %v1214 = vmul.f32 %v1198, 0.7978846
    %v1215 = vmul.f32 %v1199, 0.7978846
    %v1216 = vmul.f32 %v1200, 0.7978846
    %v1217 = vmul.f32 %v1201, 0.7978846
    %v1218 = vmul.f32 %v1202, 0.7978846
    %v1219 = vmul.f32 %v1203, 0.7978846
    %v1220 = vmul.f32 %v1204, 0.7978846
    %v1221 = vmul.f32 %v1205, 0.7978846
    %v1222 = vmul.f32 %v1206, 0.7978846
    %v1223 = vmul.f32 %v1207, 0.7978846
    %v1224 = vtanh.pop %v1208
    %v1225 = vtanh.pop %v1209
    %v1226 = vtanh.pop %v1210
    %v1227 = vtanh.pop %v1211
    %v1228 = vtanh.pop %v1212
    %v1229 = vtanh.pop %v1213
    %v1230 = vtanh.pop %v1214
    %v1231 = vtanh.pop %v1215
    %v1232 = vtanh.pop %v1216
    %v1233 = vtanh.pop %v1217
    %v1234 = vtanh.pop %v1218
    %v1235 = vtanh.pop %v1219
    %v1236 = vtanh.pop %v1220
    %v1237 = vtanh.pop %v1221
    %v1238 = vtanh.pop %v1222
    %v1239 = vtanh.pop %v1223
    %v1240 = vadd.f32 %v1224, 1.0
    %v1241 = vadd.f32 %v1225, 1.0
    %v1242 = vadd.f32 %v1226, 1.0
    %v1243 = vadd.f32 %v1227, 1.0
    %v1244 = vadd.f32 %v1228, 1.0
    %v1245 = vadd.f32 %v1229, 1.0
    %v1246 = vadd.f32 %v1230, 1.0
    %v1247 = vadd.f32 %v1231, 1.0
    %v1248 = vadd.f32 %v1232, 1.0
    %v1249 = vadd.f32 %v1233, 1.0
    %v1250 = vadd.f32 %v1234, 1.0
    %v1251 = vadd.f32 %v1235, 1.0
    %v1252 = vadd.f32 %v1236, 1.0
    %v1253 = vadd.f32 %v1237, 1.0
    %v1254 = vadd.f32 %v1238, 1.0
    %v1255 = vadd.f32 %v1239, 1.0
    %v1256 = vmul.f32 %v1240, 0.5
    %v1257 = vmul.f32 %v1241, 0.5
    %v1258 = vmul.f32 %v1242, 0.5
    %v1259 = vmul.f32 %v1243, 0.5
    %v1260 = vmul.f32 %v1244, 0.5
    %v1261 = vmul.f32 %v1245, 0.5
    %v1262 = vmul.f32 %v1246, 0.5
    %v1263 = vmul.f32 %v1247, 0.5
    %v1264 = vmul.f32 %v1248, 0.5
    %v1265 = vmul.f32 %v1249, 0.5
    %v1266 = vmul.f32 %v1250, 0.5
    %v1267 = vmul.f32 %v1251, 0.5
    %v1268 = vmul.f32 %v1252, 0.5
    %v1269 = vmul.f32 %v1253, 0.5
    %v1270 = vmul.f32 %v1254, 0.5
    %v1271 = vmul.f32 %v1255, 0.5
    %v1272 = vmul.f32 %v1007, %v1256
    %v1273 = vmul.f32 %v1009, %v1257
    %v1274 = vmul.f32 %v1050, %v1258
    %v1275 = vmul.f32 %v1052, %v1259
    %v1276 = vmul.f32 %v1093, %v1260
    %v1277 = vmul.f32 %v1095, %v1261
    %v1278 = vmul.f32 %v1136, %v1262
    %v1279 = vmul.f32 %v1138, %v1263
    %v1280 = vmul.f32 %v1011, %v1264
    %v1281 = vmul.f32 %v1013, %v1265
    %v1282 = vmul.f32 %v1054, %v1266
    %v1283 = vmul.f32 %v1056, %v1267
    %v1284 = vmul.f32 %v1097, %v1268
    %v1285 = vmul.f32 %v1099, %v1269
    %v1286 = vmul.f32 %v1140, %v1270
    %v1287 = vmul.f32 %v1142, %v1271
    %v1288 = vpack.c.bf16 %v1280, %v1272
    %v1289 = vpack.c.bf16 %v1281, %v1273
    %v1290 = vpack.c.bf16 %v1282, %v1274
    %v1291 = vpack.c.bf16 %v1283, %v1275
    %v1292 = vpack.c.bf16 %v1284, %v1276
    %v1293 = vpack.c.bf16 %v1285, %v1277
    %v1294 = vpack.c.bf16 %v1286, %v1278
    %v1295 = vpack.c.bf16 %v1287, %v1279
    %v1296 = vld [vmem:[#allocation8] sm:$0xff]
    %v1297 = vld [vmem:[#allocation8 + $0x8] sm:$0xff]
    %v1298 = vld [vmem:[#allocation8 + $0x10] sm:$0xff]
    %v1299 = vld [vmem:[#allocation8 + $0x18] sm:$0xff]
    %v1300 = vld [vmem:[#allocation8 + $0x20] sm:$0xff]
    %v1301 = vld [vmem:[#allocation8 + $0x28] sm:$0xff]
    %v1302 = vld [vmem:[#allocation8 + $0x30] sm:$0xff]
    %v1303 = vld [vmem:[#allocation8 + $0x38] sm:$0xff]
    %v1304 = vld [vmem:[#allocation8 + $0x40] sm:$0xff]
    %v1305 = vld [vmem:[#allocation8 + $0x48] sm:$0xff]
    %v1306 = vld [vmem:[#allocation8 + $0x50] sm:$0xff]
    %v1307 = vld [vmem:[#allocation8 + $0x58] sm:$0xff]
    %v1308 = vld [vmem:[#allocation8 + $0x60] sm:$0xff]
    %v1309 = vld [vmem:[#allocation8 + $0x68] sm:$0xff]
    %v1310 = vld [vmem:[#allocation8 + $0x70] sm:$0xff]
    %v1311 = vld [vmem:[#allocation8 + $0x78] sm:$0xff]
    %v1312 = vld [vmem:[#allocation8 + $0x80] sm:$0xff]
    %v1313 = vld [vmem:[#allocation8 + $0x88] sm:$0xff]
    %v1314 = vld [vmem:[#allocation8 + $0x90] sm:$0xff]
    %v1315 = vld [vmem:[#allocation8 + $0x98] sm:$0xff]
    %v1316 = vld [vmem:[#allocation8 + $0xa0] sm:$0xff]
    %v1317 = vld [vmem:[#allocation8 + $0xa8] sm:$0xff]
    %v1318 = vld [vmem:[#allocation8 + $0xb0] sm:$0xff]
    %v1319 = vld [vmem:[#allocation8 + $0xb8] sm:$0xff]
    %v1320 = vld [vmem:[#allocation8 + $0xc0] sm:$0xff]
    %v1321 = vld [vmem:[#allocation8 + $0xc8] sm:$0xff]
    %v1322 = vld [vmem:[#allocation8 + $0xd0] sm:$0xff]
    %v1323 = vld [vmem:[#allocation8 + $0xd8] sm:$0xff]
    %v1324 = vld [vmem:[#allocation8 + $0xe0] sm:$0xff]
    %v1325 = vld [vmem:[#allocation8 + $0xe8] sm:$0xff]
    %v1326 = vld [vmem:[#allocation8 + $0xf0] sm:$0xff]
    %v1327 = vld [vmem:[#allocation8 + $0xf8] sm:$0xff]
    %v1328 = vld [vmem:[#allocation8 + $0x100] sm:$0xff]
    %v1329 = vld [vmem:[#allocation8 + $0x108] sm:$0xff]
    %v1330 = vld [vmem:[#allocation8 + $0x110] sm:$0xff]
    %v1331 = vld [vmem:[#allocation8 + $0x118] sm:$0xff]
    %v1332 = vld [vmem:[#allocation8 + $0x120] sm:$0xff]
    %v1333 = vld [vmem:[#allocation8 + $0x128] sm:$0xff]
    %v1334 = vld [vmem:[#allocation8 + $0x130] sm:$0xff]
    %v1335 = vld [vmem:[#allocation8 + $0x138] sm:$0xff]
    %v1336 = vld [vmem:[#allocation8 + $0x140] sm:$0xff]
    %v1337 = vld [vmem:[#allocation8 + $0x148] sm:$0xff]
    %v1338 = vld [vmem:[#allocation8 + $0x150] sm:$0xff]
    %v1339 = vld [vmem:[#allocation8 + $0x158] sm:$0xff]
    %v1340 = vld [vmem:[#allocation8 + $0x160] sm:$0xff]
    %v1341 = vld [vmem:[#allocation8 + $0x168] sm:$0xff]
    %v1342 = vld [vmem:[#allocation8 + $0x170] sm:$0xff]
    %v1343 = vld [vmem:[#allocation8 + $0x178] sm:$0xff]
    %v1344 = vld [vmem:[#allocation8 + $0x180] sm:$0xff]
    %v1345 = vld [vmem:[#allocation8 + $0x188] sm:$0xff]
    %v1346 = vld [vmem:[#allocation8 + $0x190] sm:$0xff]
    %v1347 = vld [vmem:[#allocation8 + $0x198] sm:$0xff]
    %v1348 = vld [vmem:[#allocation8 + $0x1a0] sm:$0xff]
    %v1349 = vld [vmem:[#allocation8 + $0x1a8] sm:$0xff]
    %v1350 = vld [vmem:[#allocation8 + $0x1b0] sm:$0xff]
    %v1351 = vld [vmem:[#allocation8 + $0x1b8] sm:$0xff]
    %v1352 = vld [vmem:[#allocation8 + $0x1c0] sm:$0xff]
    %v1353 = vld [vmem:[#allocation8 + $0x1c8] sm:$0xff]
    %v1354 = vld [vmem:[#allocation8 + $0x1d0] sm:$0xff]
    %v1355 = vld [vmem:[#allocation8 + $0x1d8] sm:$0xff]
    %v1356 = vld [vmem:[#allocation8 + $0x1e0] sm:$0xff]
    %v1357 = vld [vmem:[#allocation8 + $0x1e8] sm:$0xff]
    %v1358 = vld [vmem:[#allocation8 + $0x1f0] sm:$0xff]
    %v1359 = vld [vmem:[#allocation8 + $0x1f8] sm:$0xff]
    %v1360 = vld [vmem:[#allocation8 + $0x200] sm:$0xff]
    %v1361 = vld [vmem:[#allocation8 + $0x208] sm:$0xff]
    %v1362 = vld [vmem:[#allocation8 + $0x210] sm:$0xff]
    %v1363 = vld [vmem:[#allocation8 + $0x218] sm:$0xff]
    %v1364 = vld [vmem:[#allocation8 + $0x220] sm:$0xff]
    %v1365 = vld [vmem:[#allocation8 + $0x228] sm:$0xff]
    %v1366 = vld [vmem:[#allocation8 + $0x230] sm:$0xff]
    %v1367 = vld [vmem:[#allocation8 + $0x238] sm:$0xff]
    %v1368 = vld [vmem:[#allocation8 + $0x240] sm:$0xff]
    %v1369 = vld [vmem:[#allocation8 + $0x248] sm:$0xff]
    %v1370 = vld [vmem:[#allocation8 + $0x250] sm:$0xff]
    %v1371 = vld [vmem:[#allocation8 + $0x258] sm:$0xff]
    %v1372 = vld [vmem:[#allocation8 + $0x260] sm:$0xff]
    %v1373 = vld [vmem:[#allocation8 + $0x268] sm:$0xff]
    %v1374 = vld [vmem:[#allocation8 + $0x270] sm:$0xff]
    %v1375 = vld [vmem:[#allocation8 + $0x278] sm:$0xff]
    %v1376 = vld [vmem:[#allocation8 + $0x280] sm:$0xff]
    %v1377 = vld [vmem:[#allocation8 + $0x288] sm:$0xff]
    %v1378 = vld [vmem:[#allocation8 + $0x290] sm:$0xff]
    %v1379 = vld [vmem:[#allocation8 + $0x298] sm:$0xff]
    %v1380 = vld [vmem:[#allocation8 + $0x2a0] sm:$0xff]
    %v1381 = vld [vmem:[#allocation8 + $0x2a8] sm:$0xff]
    %v1382 = vld [vmem:[#allocation8 + $0x2b0] sm:$0xff]
    %v1383 = vld [vmem:[#allocation8 + $0x2b8] sm:$0xff]
    %v1384 = vld [vmem:[#allocation8 + $0x2c0] sm:$0xff]
    %v1385 = vld [vmem:[#allocation8 + $0x2c8] sm:$0xff]
    %v1386 = vld [vmem:[#allocation8 + $0x2d0] sm:$0xff]
    %v1387 = vld [vmem:[#allocation8 + $0x2d8] sm:$0xff]
    %v1388 = vld [vmem:[#allocation8 + $0x2e0] sm:$0xff]
    %v1389 = vld [vmem:[#allocation8 + $0x2e8] sm:$0xff]
    %v1390 = vld [vmem:[#allocation8 + $0x2f0] sm:$0xff]
    %v1391 = vld [vmem:[#allocation8 + $0x2f8] sm:$0xff]
    %v1392 = vld [vmem:[#allocation8 + $0x300] sm:$0xff]
    %v1393 = vld [vmem:[#allocation8 + $0x308] sm:$0xff]
    %v1394 = vld [vmem:[#allocation8 + $0x310] sm:$0xff]
    %v1395 = vld [vmem:[#allocation8 + $0x318] sm:$0xff]
    %v1396 = vld [vmem:[#allocation8 + $0x320] sm:$0xff]
    %v1397 = vld [vmem:[#allocation8 + $0x328] sm:$0xff]
    %v1398 = vld [vmem:[#allocation8 + $0x330] sm:$0xff]
    %v1399 = vld [vmem:[#allocation8 + $0x338] sm:$0xff]
    %v1400 = vld [vmem:[#allocation8 + $0x340] sm:$0xff]
    %v1401 = vld [vmem:[#allocation8 + $0x348] sm:$0xff]
    %v1402 = vld [vmem:[#allocation8 + $0x350] sm:$0xff]
    %v1403 = vld [vmem:[#allocation8 + $0x358] sm:$0xff]
    %v1404 = vld [vmem:[#allocation8 + $0x360] sm:$0xff]
    %v1405 = vld [vmem:[#allocation8 + $0x368] sm:$0xff]
    %v1406 = vld [vmem:[#allocation8 + $0x370] sm:$0xff]
    %v1407 = vld [vmem:[#allocation8 + $0x378] sm:$0xff]
    %v1408 = vld [vmem:[#allocation8 + $0x380] sm:$0xff]
    %v1409 = vld [vmem:[#allocation8 + $0x388] sm:$0xff]
    %v1410 = vld [vmem:[#allocation8 + $0x390] sm:$0xff]
    %v1411 = vld [vmem:[#allocation8 + $0x398] sm:$0xff]
    %v1412 = vld [vmem:[#allocation8 + $0x3a0] sm:$0xff]
    %v1413 = vld [vmem:[#allocation8 + $0x3a8] sm:$0xff]
    %v1414 = vld [vmem:[#allocation8 + $0x3b0] sm:$0xff]
    %v1415 = vld [vmem:[#allocation8 + $0x3b8] sm:$0xff]
    %v1416 = vld [vmem:[#allocation8 + $0x3c0] sm:$0xff]
    %v1417 = vld [vmem:[#allocation8 + $0x3c8] sm:$0xff]
    %v1418 = vld [vmem:[#allocation8 + $0x3d0] sm:$0xff]
    %v1419 = vld [vmem:[#allocation8 + $0x3d8] sm:$0xff]
    %v1420 = vld [vmem:[#allocation8 + $0x3e0] sm:$0xff]
    %v1421 = vld [vmem:[#allocation8 + $0x3e8] sm:$0xff]
    %v1422 = vld [vmem:[#allocation8 + $0x3f0] sm:$0xff]
    %v1423 = vld [vmem:[#allocation8 + $0x3f8] sm:$0xff]
    %v1424 = vld [vmem:[#allocation10] sm:$0x3]
    %v1426 = vlaneseq
    %v1427 = vshrl.u32 %v1426, 7
    %v1428 = vsub.s32 0, %v1427
    %v1429 = vrot.slane %v1424, %v1428
    %v1430 = vlaneseq
    %v1431 = vshrl.u32 %v1430, 7
    %v1432 = vsub.s32 1, %v1431
    %v1433 = vrot.slane %v1424, %v1432
    %v1564 = vunpack.c.l.b16 %v1296
    %v1565 = vunpack.c.h.b16 %v1296
    %v1566 = vunpack.c.l.b16 %v1297
    %v1567 = vunpack.c.h.b16 %v1297
    %v1568 = vunpack.c.l.b16 %v1298
    %v1569 = vunpack.c.h.b16 %v1298
    %v1570 = vunpack.c.l.b16 %v1299
    %v1571 = vunpack.c.h.b16 %v1299
    %v1572 = vunpack.c.l.b16 %v1300
    %v1573 = vunpack.c.h.b16 %v1300
    %v1574 = vunpack.c.l.b16 %v1301
    %v1575 = vunpack.c.h.b16 %v1301
    %v1576 = vunpack.c.l.b16 %v1302
    %v1577 = vunpack.c.h.b16 %v1302
    %v1578 = vunpack.c.l.b16 %v1303
    %v1579 = vunpack.c.h.b16 %v1303
    %v1580 = vunpack.c.l.b16 %v1304
    %v1581 = vunpack.c.h.b16 %v1304
    %v1582 = vunpack.c.l.b16 %v1305
    %v1583 = vunpack.c.h.b16 %v1305
    %v1584 = vunpack.c.l.b16 %v1306
    %v1585 = vunpack.c.h.b16 %v1306
    %v1586 = vunpack.c.l.b16 %v1307
    %v1587 = vunpack.c.h.b16 %v1307
    %v1588 = vunpack.c.l.b16 %v1308
    %v1589 = vunpack.c.h.b16 %v1308
    %v1590 = vunpack.c.l.b16 %v1309
    %v1591 = vunpack.c.h.b16 %v1309
    %v1592 = vunpack.c.l.b16 %v1310
    %v1593 = vunpack.c.h.b16 %v1310
    %v1594 = vunpack.c.l.b16 %v1311
    %v1595 = vunpack.c.h.b16 %v1311
    %v1596 = vunpack.c.l.b16 %v1312
    %v1597 = vunpack.c.h.b16 %v1312
    %v1598 = vunpack.c.l.b16 %v1313
    %v1599 = vunpack.c.h.b16 %v1313
    %v1600 = vunpack.c.l.b16 %v1314
    %v1601 = vunpack.c.h.b16 %v1314
    %v1602 = vunpack.c.l.b16 %v1315
    %v1603 = vunpack.c.h.b16 %v1315
    %v1604 = vunpack.c.l.b16 %v1316
    %v1605 = vunpack.c.h.b16 %v1316
    %v1606 = vunpack.c.l.b16 %v1317
    %v1607 = vunpack.c.h.b16 %v1317
    %v1608 = vunpack.c.l.b16 %v1318
    %v1609 = vunpack.c.h.b16 %v1318
    %v1610 = vunpack.c.l.b16 %v1319
    %v1611 = vunpack.c.h.b16 %v1319
    %v1612 = vunpack.c.l.b16 %v1320
    %v1613 = vunpack.c.h.b16 %v1320
    %v1614 = vunpack.c.l.b16 %v1321
    %v1615 = vunpack.c.h.b16 %v1321
    %v1616 = vunpack.c.l.b16 %v1322
    %v1617 = vunpack.c.h.b16 %v1322
    %v1618 = vunpack.c.l.b16 %v1323
    %v1619 = vunpack.c.h.b16 %v1323
    %v1620 = vunpack.c.l.b16 %v1324
    %v1621 = vunpack.c.h.b16 %v1324
    %v1622 = vunpack.c.l.b16 %v1325
    %v1623 = vunpack.c.h.b16 %v1325
    %v1624 = vunpack.c.l.b16 %v1326
    %v1625 = vunpack.c.h.b16 %v1326
    %v1626 = vunpack.c.l.b16 %v1327
    %v1627 = vunpack.c.h.b16 %v1327
    %v1628 = vunpack.c.l.b16 %v1328
    %v1629 = vunpack.c.h.b16 %v1328
    %v1630 = vunpack.c.l.b16 %v1329
    %v1631 = vunpack.c.h.b16 %v1329
    %v1632 = vunpack.c.l.b16 %v1330
    %v1633 = vunpack.c.h.b16 %v1330
    %v1634 = vunpack.c.l.b16 %v1331
    %v1635 = vunpack.c.h.b16 %v1331
    %v1636 = vunpack.c.l.b16 %v1332
    %v1637 = vunpack.c.h.b16 %v1332
    %v1638 = vunpack.c.l.b16 %v1333
    %v1639 = vunpack.c.h.b16 %v1333
    %v1640 = vunpack.c.l.b16 %v1334
    %v1641 = vunpack.c.h.b16 %v1334
    %v1642 = vunpack.c.l.b16 %v1335
    %v1643 = vunpack.c.h.b16 %v1335
    %v1644 = vunpack.c.l.b16 %v1336
    %v1645 = vunpack.c.h.b16 %v1336
    %v1646 = vunpack.c.l.b16 %v1337
    %v1647 = vunpack.c.h.b16 %v1337
    %v1648 = vunpack.c.l.b16 %v1338
    %v1649 = vunpack.c.h.b16 %v1338
    %v1650 = vunpack.c.l.b16 %v1339
    %v1651 = vunpack.c.h.b16 %v1339
    %v1652 = vunpack.c.l.b16 %v1340
    %v1653 = vunpack.c.h.b16 %v1340
    %v1654 = vunpack.c.l.b16 %v1341
    %v1655 = vunpack.c.h.b16 %v1341
    %v1656 = vunpack.c.l.b16 %v1342
    %v1657 = vunpack.c.h.b16 %v1342
    %v1658 = vunpack.c.l.b16 %v1343
    %v1659 = vunpack.c.h.b16 %v1343
    %v1660 = vunpack.c.l.b16 %v1344
    %v1661 = vunpack.c.h.b16 %v1344
    %v1662 = vunpack.c.l.b16 %v1345
    %v1663 = vunpack.c.h.b16 %v1345
    %v1664 = vunpack.c.l.b16 %v1346
    %v1665 = vunpack.c.h.b16 %v1346
    %v1666 = vunpack.c.l.b16 %v1347
    %v1667 = vunpack.c.h.b16 %v1347
    %v1668 = vunpack.c.l.b16 %v1348
    %v1669 = vunpack.c.h.b16 %v1348
    %v1670 = vunpack.c.l.b16 %v1349
    %v1671 = vunpack.c.h.b16 %v1349
    %v1672 = vunpack.c.l.b16 %v1350
    %v1673 = vunpack.c.h.b16 %v1350
    %v1674 = vunpack.c.l.b16 %v1351
    %v1675 = vunpack.c.h.b16 %v1351
    %v1676 = vunpack.c.l.b16 %v1352
    %v1677 = vunpack.c.h.b16 %v1352
    %v1678 = vunpack.c.l.b16 %v1353
    %v1679 = vunpack.c.h.b16 %v1353
    %v1680 = vunpack.c.l.b16 %v1354
    %v1681 = vunpack.c.h.b16 %v1354
    %v1682 = vunpack.c.l.b16 %v1355
    %v1683 = vunpack.c.h.b16 %v1355
    %v1684 = vunpack.c.l.b16 %v1356
    %v1685 = vunpack.c.h.b16 %v1356
    %v1686 = vunpack.c.l.b16 %v1357
    %v1687 = vunpack.c.h.b16 %v1357
    %v1688 = vunpack.c.l.b16 %v1358
    %v1689 = vunpack.c.h.b16 %v1358
    %v1690 = vunpack.c.l.b16 %v1359
    %v1691 = vunpack.c.h.b16 %v1359
    %v1692 = vunpack.c.l.b16 %v1360
    %v1693 = vunpack.c.h.b16 %v1360
    %v1694 = vunpack.c.l.b16 %v1361
    %v1695 = vunpack.c.h.b16 %v1361
    %v1696 = vunpack.c.l.b16 %v1362
    %v1697 = vunpack.c.h.b16 %v1362
    %v1698 = vunpack.c.l.b16 %v1363
    %v1699 = vunpack.c.h.b16 %v1363
    %v1700 = vunpack.c.l.b16 %v1364
    %v1701 = vunpack.c.h.b16 %v1364
    %v1702 = vunpack.c.l.b16 %v1365
    %v1703 = vunpack.c.h.b16 %v1365
    %v1704 = vunpack.c.l.b16 %v1366
    %v1705 = vunpack.c.h.b16 %v1366
    %v1706 = vunpack.c.l.b16 %v1367
    %v1707 = vunpack.c.h.b16 %v1367
    %v1708 = vunpack.c.l.b16 %v1368
    %v1709 = vunpack.c.h.b16 %v1368
    %v1710 = vunpack.c.l.b16 %v1369
    %v1711 = vunpack.c.h.b16 %v1369
    %v1712 = vunpack.c.l.b16 %v1370
    %v1713 = vunpack.c.h.b16 %v1370
    %v1714 = vunpack.c.l.b16 %v1371
    %v1715 = vunpack.c.h.b16 %v1371
    %v1716 = vunpack.c.l.b16 %v1372
    %v1717 = vunpack.c.h.b16 %v1372
    %v1718 = vunpack.c.l.b16 %v1373
    %v1719 = vunpack.c.h.b16 %v1373
    %v1720 = vunpack.c.l.b16 %v1374
    %v1721 = vunpack.c.h.b16 %v1374
    %v1722 = vunpack.c.l.b16 %v1375
    %v1723 = vunpack.c.h.b16 %v1375
    %v1724 = vunpack.c.l.b16 %v1376
    %v1725 = vunpack.c.h.b16 %v1376
    %v1726 = vunpack.c.l.b16 %v1377
    %v1727 = vunpack.c.h.b16 %v1377
    %v1728 = vunpack.c.l.b16 %v1378
    %v1729 = vunpack.c.h.b16 %v1378
    %v1730 = vunpack.c.l.b16 %v1379
    %v1731 = vunpack.c.h.b16 %v1379
    %v1732 = vunpack.c.l.b16 %v1380
    %v1733 = vunpack.c.h.b16 %v1380
    %v1734 = vunpack.c.l.b16 %v1381
    %v1735 = vunpack.c.h.b16 %v1381
    %v1736 = vunpack.c.l.b16 %v1382
    %v1737 = vunpack.c.h.b16 %v1382
    %v1738 = vunpack.c.l.b16 %v1383
    %v1739 = vunpack.c.h.b16 %v1383
    %v1740 = vunpack.c.l.b16 %v1384
    %v1741 = vunpack.c.h.b16 %v1384
    %v1742 = vunpack.c.l.b16 %v1385
    %v1743 = vunpack.c.h.b16 %v1385
    %v1744 = vunpack.c.l.b16 %v1386
    %v1745 = vunpack.c.h.b16 %v1386
    %v1746 = vunpack.c.l.b16 %v1387
    %v1747 = vunpack.c.h.b16 %v1387
    %v1748 = vunpack.c.l.b16 %v1388
    %v1749 = vunpack.c.h.b16 %v1388
    %v1750 = vunpack.c.l.b16 %v1389
    %v1751 = vunpack.c.h.b16 %v1389
    %v1752 = vunpack.c.l.b16 %v1390
    %v1753 = vunpack.c.h.b16 %v1390
    %v1754 = vunpack.c.l.b16 %v1391
    %v1755 = vunpack.c.h.b16 %v1391
    %v1756 = vunpack.c.l.b16 %v1392
    %v1757 = vunpack.c.h.b16 %v1392
    %v1758 = vunpack.c.l.b16 %v1393
    %v1759 = vunpack.c.h.b16 %v1393
    %v1760 = vunpack.c.l.b16 %v1394
    %v1761 = vunpack.c.h.b16 %v1394
    %v1762 = vunpack.c.l.b16 %v1395
    %v1763 = vunpack.c.h.b16 %v1395
    %v1764 = vunpack.c.l.b16 %v1396
    %v1765 = vunpack.c.h.b16 %v1396
    %v1766 = vunpack.c.l.b16 %v1397
    %v1767 = vunpack.c.h.b16 %v1397
    %v1768 = vunpack.c.l.b16 %v1398
    %v1769 = vunpack.c.h.b16 %v1398
    %v1770 = vunpack.c.l.b16 %v1399
    %v1771 = vunpack.c.h.b16 %v1399
    %v1772 = vunpack.c.l.b16 %v1400
    %v1773 = vunpack.c.h.b16 %v1400
    %v1774 = vunpack.c.l.b16 %v1401
    %v1775 = vunpack.c.h.b16 %v1401
    %v1776 = vunpack.c.l.b16 %v1402
    %v1777 = vunpack.c.h.b16 %v1402
    %v1778 = vunpack.c.l.b16 %v1403
    %v1779 = vunpack.c.h.b16 %v1403
    %v1780 = vunpack.c.l.b16 %v1404
    %v1781 = vunpack.c.h.b16 %v1404
    %v1782 = vunpack.c.l.b16 %v1405
    %v1783 = vunpack.c.h.b16 %v1405
    %v1784 = vunpack.c.l.b16 %v1406
    %v1785 = vunpack.c.h.b16 %v1406
    %v1786 = vunpack.c.l.b16 %v1407
    %v1787 = vunpack.c.h.b16 %v1407
    %v1788 = vunpack.c.l.b16 %v1408
    %v1789 = vunpack.c.h.b16 %v1408
    %v1790 = vunpack.c.l.b16 %v1409
    %v1791 = vunpack.c.h.b16 %v1409
    %v1792 = vunpack.c.l.b16 %v1410
    %v1793 = vunpack.c.h.b16 %v1410
    %v1794 = vunpack.c.l.b16 %v1411
    %v1795 = vunpack.c.h.b16 %v1411
    %v1796 = vunpack.c.l.b16 %v1412
    %v1797 = vunpack.c.h.b16 %v1412
    %v1798 = vunpack.c.l.b16 %v1413
    %v1799 = vunpack.c.h.b16 %v1413
    %v1800 = vunpack.c.l.b16 %v1414
    %v1801 = vunpack.c.h.b16 %v1414
    %v1802 = vunpack.c.l.b16 %v1415
    %v1803 = vunpack.c.h.b16 %v1415
    %v1804 = vunpack.c.l.b16 %v1416
    %v1805 = vunpack.c.h.b16 %v1416
    %v1806 = vunpack.c.l.b16 %v1417
    %v1807 = vunpack.c.h.b16 %v1417
    %v1808 = vunpack.c.l.b16 %v1418
    %v1809 = vunpack.c.h.b16 %v1418
    %v1810 = vunpack.c.l.b16 %v1419
    %v1811 = vunpack.c.h.b16 %v1419
    %v1812 = vunpack.c.l.b16 %v1420
    %v1813 = vunpack.c.h.b16 %v1420
    %v1814 = vunpack.c.l.b16 %v1421
    %v1815 = vunpack.c.h.b16 %v1421
    %v1816 = vunpack.c.l.b16 %v1422
    %v1817 = vunpack.c.h.b16 %v1422
    %v1818 = vunpack.c.l.b16 %v1423
    %v1819 = vunpack.c.h.b16 %v1423
    %v1820 = vpack.c.b16 %v1566, %v1564
    %v1821 = vpack.c.b16 %v1567, %v1565
    %v1822 = vpack.c.b16 %v1570, %v1568
    %v1823 = vpack.c.b16 %v1571, %v1569
    %v1824 = vpack.c.b16 %v1574, %v1572
    %v1825 = vpack.c.b16 %v1575, %v1573
    %v1826 = vpack.c.b16 %v1578, %v1576
    %v1827 = vpack.c.b16 %v1579, %v1577
    %v1828 = vpack.c.b16 %v1582, %v1580
    %v1829 = vpack.c.b16 %v1583, %v1581
    %v1830 = vpack.c.b16 %v1586, %v1584
    %v1831 = vpack.c.b16 %v1587, %v1585
    %v1832 = vpack.c.b16 %v1590, %v1588
    %v1833 = vpack.c.b16 %v1591, %v1589
    %v1834 = vpack.c.b16 %v1594, %v1592
    %v1835 = vpack.c.b16 %v1595, %v1593
    %v1836 = vpack.c.b16 %v1598, %v1596
    %v1837 = vpack.c.b16 %v1599, %v1597
    %v1838 = vpack.c.b16 %v1602, %v1600
    %v1839 = vpack.c.b16 %v1603, %v1601
    %v1840 = vpack.c.b16 %v1606, %v1604
    %v1841 = vpack.c.b16 %v1607, %v1605
    %v1842 = vpack.c.b16 %v1610, %v1608
    %v1843 = vpack.c.b16 %v1611, %v1609
    %v1844 = vpack.c.b16 %v1614, %v1612
    %v1845 = vpack.c.b16 %v1615, %v1613
    %v1846 = vpack.c.b16 %v1618, %v1616
    %v1847 = vpack.c.b16 %v1619, %v1617
    %v1848 = vpack.c.b16 %v1622, %v1620
    %v1849 = vpack.c.b16 %v1623, %v1621
    %v1850 = vpack.c.b16 %v1626, %v1624
    %v1851 = vpack.c.b16 %v1627, %v1625
    %v1852 = vpack.c.b16 %v1630, %v1628
    %v1853 = vpack.c.b16 %v1631, %v1629
    %v1854 = vpack.c.b16 %v1634, %v1632
    %v1855 = vpack.c.b16 %v1635, %v1633
    %v1856 = vpack.c.b16 %v1638, %v1636
    %v1857 = vpack.c.b16 %v1639, %v1637
    %v1858 = vpack.c.b16 %v1642, %v1640
    %v1859 = vpack.c.b16 %v1643, %v1641
    %v1860 = vpack.c.b16 %v1646, %v1644
    %v1861 = vpack.c.b16 %v1647, %v1645
    %v1862 = vpack.c.b16 %v1650, %v1648
    %v1863 = vpack.c.b16 %v1651, %v1649
    %v1864 = vpack.c.b16 %v1654, %v1652
    %v1865 = vpack.c.b16 %v1655, %v1653
    %v1866 = vpack.c.b16 %v1658, %v1656
    %v1867 = vpack.c.b16 %v1659, %v1657
    %v1868 = vpack.c.b16 %v1662, %v1660
    %v1869 = vpack.c.b16 %v1663, %v1661
    %v1870 = vpack.c.b16 %v1666, %v1664
    %v1871 = vpack.c.b16 %v1667, %v1665
    %v1872 = vpack.c.b16 %v1670, %v1668
    %v1873 = vpack.c.b16 %v1671, %v1669
    %v1874 = vpack.c.b16 %v1674, %v1672
    %v1875 = vpack.c.b16 %v1675, %v1673
    %v1876 = vpack.c.b16 %v1678, %v1676
    %v1877 = vpack.c.b16 %v1679, %v1677
    %v1878 = vpack.c.b16 %v1682, %v1680
    %v1879 = vpack.c.b16 %v1683, %v1681
    %v1880 = vpack.c.b16 %v1686, %v1684
    %v1881 = vpack.c.b16 %v1687, %v1685
    %v1882 = vpack.c.b16 %v1690, %v1688
    %v1883 = vpack.c.b16 %v1691, %v1689
    %v1884 = vpack.c.b16 %v1694, %v1692
    %v1885 = vpack.c.b16 %v1695, %v1693
    %v1886 = vpack.c.b16 %v1698, %v1696
    %v1887 = vpack.c.b16 %v1699, %v1697
    %v1888 = vpack.c.b16 %v1702, %v1700
    %v1889 = vpack.c.b16 %v1703, %v1701
    %v1890 = vpack.c.b16 %v1706, %v1704
    %v1891 = vpack.c.b16 %v1707, %v1705
    %v1892 = vpack.c.b16 %v1710, %v1708
    %v1893 = vpack.c.b16 %v1711, %v1709
    %v1894 = vpack.c.b16 %v1714, %v1712
    %v1895 = vpack.c.b16 %v1715, %v1713
    %v1896 = vpack.c.b16 %v1718, %v1716
    %v1897 = vpack.c.b16 %v1719, %v1717
    %v1898 = vpack.c.b16 %v1722, %v1720
    %v1899 = vpack.c.b16 %v1723, %v1721
    %v1900 = vpack.c.b16 %v1726, %v1724
    %v1901 = vpack.c.b16 %v1727, %v1725
    %v1902 = vpack.c.b16 %v1730, %v1728
    %v1903 = vpack.c.b16 %v1731, %v1729
    %v1904 = vpack.c.b16 %v1734, %v1732
    %v1905 = vpack.c.b16 %v1735, %v1733
    %v1906 = vpack.c.b16 %v1738, %v1736
    %v1907 = vpack.c.b16 %v1739, %v1737
    %v1908 = vpack.c.b16 %v1742, %v1740
    %v1909 = vpack.c.b16 %v1743, %v1741
    %v1910 = vpack.c.b16 %v1746, %v1744
    %v1911 = vpack.c.b16 %v1747, %v1745
    %v1912 = vpack.c.b16 %v1750, %v1748
    %v1913 = vpack.c.b16 %v1751, %v1749
    %v1914 = vpack.c.b16 %v1754, %v1752
    %v1915 = vpack.c.b16 %v1755, %v1753
    %v1916 = vpack.c.b16 %v1758, %v1756
    %v1917 = vpack.c.b16 %v1759, %v1757
    %v1918 = vpack.c.b16 %v1762, %v1760
    %v1919 = vpack.c.b16 %v1763, %v1761
    %v1920 = vpack.c.b16 %v1766, %v1764
    %v1921 = vpack.c.b16 %v1767, %v1765
    %v1922 = vpack.c.b16 %v1770, %v1768
    %v1923 = vpack.c.b16 %v1771, %v1769
    %v1924 = vpack.c.b16 %v1774, %v1772
    %v1925 = vpack.c.b16 %v1775, %v1773
    %v1926 = vpack.c.b16 %v1778, %v1776
    %v1927 = vpack.c.b16 %v1779, %v1777
    %v1928 = vpack.c.b16 %v1782, %v1780
    %v1929 = vpack.c.b16 %v1783, %v1781
    %v1930 = vpack.c.b16 %v1786, %v1784
    %v1931 = vpack.c.b16 %v1787, %v1785
    %v1932 = vpack.c.b16 %v1790, %v1788
    %v1933 = vpack.c.b16 %v1791, %v1789
    %v1934 = vpack.c.b16 %v1794, %v1792
    %v1935 = vpack.c.b16 %v1795, %v1793
    %v1936 = vpack.c.b16 %v1798, %v1796
    %v1937 = vpack.c.b16 %v1799, %v1797
    %v1938 = vpack.c.b16 %v1802, %v1800
    %v1939 = vpack.c.b16 %v1803, %v1801
    %v1940 = vpack.c.b16 %v1806, %v1804
    %v1941 = vpack.c.b16 %v1807, %v1805
    %v1942 = vpack.c.b16 %v1810, %v1808
    %v1943 = vpack.c.b16 %v1811, %v1809
    %v1944 = vpack.c.b16 %v1814, %v1812
    %v1945 = vpack.c.b16 %v1815, %v1813
    %v1946 = vpack.c.b16 %v1818, %v1816
    %v1947 = vpack.c.b16 %v1819, %v1817
    %2076 = vmatprep.subr.bf16.mxu0 %v1835
    %2077 = vmatpush1.bf16.msra.mxu0 %v1834
    %2078 = vmatprep.subr.bf16.mxu0 %v1833
    %2079 = vmatpush1.bf16.msra.mxu0 %v1832
    %2080 = vmatprep.subr.bf16.mxu0 %v1831
    %2081 = vmatpush1.bf16.msra.mxu0 %v1830
    %2082 = vmatprep.subr.bf16.mxu0 %v1829
    %2083 = vmatpush1.bf16.msra.mxu0 %v1828
    %2084 = vmatprep.subr.bf16.mxu0 %v1827
    %2085 = vmatpush1.bf16.msra.mxu0 %v1826
    %2086 = vmatprep.subr.bf16.mxu0 %v1825
    %2087 = vmatpush1.bf16.msra.mxu0 %v1824
    %2088 = vmatprep.subr.bf16.mxu0 %v1823
    %2089 = vmatpush1.bf16.msra.mxu0 %v1822
    %2090 = vmatprep.subr.bf16.mxu0 %v1821
    %2091 = vmatpush1.bf16.msra.mxu0 %v1820
    %2092 = vmatprep.subr.bf16.mxu0 %v1851
    %2093 = vmatpush2.bf16.msra.mxu0 %v1850
    %2094 = vmatprep.subr.bf16.mxu0 %v1849
    %2095 = vmatpush2.bf16.msra.mxu0 %v1848
    %2096 = vmatprep.subr.bf16.mxu0 %v1847
    %2097 = vmatpush2.bf16.msra.mxu0 %v1846
    %2098 = vmatprep.subr.bf16.mxu0 %v1845
    %2099 = vmatpush2.bf16.msra.mxu0 %v1844
    %2100 = vmatprep.subr.bf16.mxu0 %v1843
    %2101 = vmatpush2.bf16.msra.mxu0 %v1842
    %2102 = vmatprep.subr.bf16.mxu0 %v1841
    %2103 = vmatpush2.bf16.msra.mxu0 %v1840
    %2104 = vmatprep.subr.bf16.mxu0 %v1839
    %2105 = vmatpush2.bf16.msra.mxu0 %v1838
    %2106 = vmatprep.subr.bf16.mxu0 %v1837
    %2107 = vmatpush2.bf16.msra.mxu0 %v1836
    %2108 = vmatprep.mubr.bf16.mxu0 %v1289
    %2109 = vmatmul.mubr.bf16.gmra.mxu0 %v1288
    %v2110 = vpop.f32.mrf.mxu0
    %v2111 = vadd.f32 %v1429, %v2110
    %v2112 = vpop.f32.mrf.mxu0
    %v2113 = vadd.f32 %v1433, %v2112
    %v2114 = vpop.f32.mrf.mxu0
    %v2115 = vadd.f32 %v1429, %v2114
    %v2116 = vpop.f32.mrf.mxu0
    %v2117 = vadd.f32 %v1433, %v2116
    %2118 = vdwg.mxu0
    %2119 = vmatprep.subr.bf16.mxu0 %v1867
    %2120 = vmatpush1.bf16.msra.mxu0 %v1866
    %2121 = vmatprep.subr.bf16.mxu0 %v1865
    %2122 = vmatpush1.bf16.msra.mxu0 %v1864
    %2123 = vmatprep.subr.bf16.mxu0 %v1863
    %2124 = vmatpush1.bf16.msra.mxu0 %v1862
    %2125 = vmatprep.subr.bf16.mxu0 %v1861
    %2126 = vmatpush1.bf16.msra.mxu0 %v1860
    %2127 = vmatprep.subr.bf16.mxu0 %v1859
    %2128 = vmatpush1.bf16.msra.mxu0 %v1858
    %2129 = vmatprep.subr.bf16.mxu0 %v1857
    %2130 = vmatpush1.bf16.msra.mxu0 %v1856
    %2131 = vmatprep.subr.bf16.mxu0 %v1855
    %2132 = vmatpush1.bf16.msra.mxu0 %v1854
    %2133 = vmatprep.subr.bf16.mxu0 %v1853
    %2134 = vmatpush1.bf16.msra.mxu0 %v1852
    %2135 = vmatprep.subr.bf16.mxu0 %v1883
    %2136 = vmatpush2.bf16.msra.mxu0 %v1882
    %2137 = vmatprep.subr.bf16.mxu0 %v1881
    %2138 = vmatpush2.bf16.msra.mxu0 %v1880
    %2139 = vmatprep.subr.bf16.mxu0 %v1879
    %2140 = vmatpush2.bf16.msra.mxu0 %v1878
    %2141 = vmatprep.subr.bf16.mxu0 %v1877
    %2142 = vmatpush2.bf16.msra.mxu0 %v1876
    %2143 = vmatprep.subr.bf16.mxu0 %v1875
    %2144 = vmatpush2.bf16.msra.mxu0 %v1874
    %2145 = vmatprep.subr.bf16.mxu0 %v1873
    %2146 = vmatpush2.bf16.msra.mxu0 %v1872
    %2147 = vmatprep.subr.bf16.mxu0 %v1871
    %2148 = vmatpush2.bf16.msra.mxu0 %v1870
    %2149 = vmatprep.subr.bf16.mxu0 %v1869
    %2150 = vmatpush2.bf16.msra.mxu0 %v1868
    %2151 = vmatprep.mubr.bf16.mxu0 %v1291
    %2152 = vmatmul.mubr.bf16.gmra.mxu0 %v1290
    %v2153 = vpop.f32.mrf.mxu0
    %v2154 = vadd.f32 %v2111, %v2153
    %v2155 = vpop.f32.mrf.mxu0
    %v2156 = vadd.f32 %v2113, %v2155
    %v2157 = vpop.f32.mrf.mxu0
    %v2158 = vadd.f32 %v2115, %v2157
    %v2159 = vpop.f32.mrf.mxu0
    %v2160 = vadd.f32 %v2117, %v2159
    %2161 = vdwg.mxu0
    %2162 = vmatprep.subr.bf16.mxu0 %v1899
    %2163 = vmatpush1.bf16.msra.mxu0 %v1898
    %2164 = vmatprep.subr.bf16.mxu0 %v1897
    %2165 = vmatpush1.bf16.msra.mxu0 %v1896
    %2166 = vmatprep.subr.bf16.mxu0 %v1895
    %2167 = vmatpush1.bf16.msra.mxu0 %v1894
    %2168 = vmatprep.subr.bf16.mxu0 %v1893
    %2169 = vmatpush1.bf16.msra.mxu0 %v1892
    %2170 = vmatprep.subr.bf16.mxu0 %v1891
    %2171 = vmatpush1.bf16.msra.mxu0 %v1890
    %2172 = vmatprep.subr.bf16.mxu0 %v1889
    %2173 = vmatpush1.bf16.msra.mxu0 %v1888
    %2174 = vmatprep.subr.bf16.mxu0 %v1887
    %2175 = vmatpush1.bf16.msra.mxu0 %v1886
    %2176 = vmatprep.subr.bf16.mxu0 %v1885
    %2177 = vmatpush1.bf16.msra.mxu0 %v1884
    %2178 = vmatprep.subr.bf16.mxu0 %v1915
    %2179 = vmatpush2.bf16.msra.mxu0 %v1914
    %2180 = vmatprep.subr.bf16.mxu0 %v1913
    %2181 = vmatpush2.bf16.msra.mxu0 %v1912
    %2182 = vmatprep.subr.bf16.mxu0 %v1911
    %2183 = vmatpush2.bf16.msra.mxu0 %v1910
    %2184 = vmatprep.subr.bf16.mxu0 %v1909
    %2185 = vmatpush2.bf16.msra.mxu0 %v1908
    %2186 = vmatprep.subr.bf16.mxu0 %v1907
    %2187 = vmatpush2.bf16.msra.mxu0 %v1906
    %2188 = vmatprep.subr.bf16.mxu0 %v1905
    %2189 = vmatpush2.bf16.msra.mxu0 %v1904
    %2190 = vmatprep.subr.bf16.mxu0 %v1903
    %2191 = vmatpush2.bf16.msra.mxu0 %v1902
    %2192 = vmatprep.subr.bf16.mxu0 %v1901
    %2193 = vmatpush2.bf16.msra.mxu0 %v1900
    %2194 = vmatprep.mubr.bf16.mxu0 %v1293
    %2195 = vmatmul.mubr.bf16.gmra.mxu0 %v1292
    %v2196 = vpop.f32.mrf.mxu0
    %v2197 = vadd.f32 %v2154, %v2196
    %v2198 = vpop.f32.mrf.mxu0
    %v2199 = vadd.f32 %v2156, %v2198
    %v2200 = vpop.f32.mrf.mxu0
    %v2201 = vadd.f32 %v2158, %v2200
    %v2202 = vpop.f32.mrf.mxu0
    %v2203 = vadd.f32 %v2160, %v2202
    %2204 = vdwg.mxu0
    %2205 = vmatprep.subr.bf16.mxu0 %v1931
    %2206 = vmatpush1.bf16.msra.mxu0 %v1930
    %2207 = vmatprep.subr.bf16.mxu0 %v1929
    %2208 = vmatpush1.bf16.msra.mxu0 %v1928
    %2209 = vmatprep.subr.bf16.mxu0 %v1927
    %2210 = vmatpush1.bf16.msra.mxu0 %v1926
    %2211 = vmatprep.subr.bf16.mxu0 %v1925
    %2212 = vmatpush1.bf16.msra.mxu0 %v1924
    %2213 = vmatprep.subr.bf16.mxu0 %v1923
    %2214 = vmatpush1.bf16.msra.mxu0 %v1922
    %2215 = vmatprep.subr.bf16.mxu0 %v1921
    %2216 = vmatpush1.bf16.msra.mxu0 %v1920
    %2217 = vmatprep.subr.bf16.mxu0 %v1919
    %2218 = vmatpush1.bf16.msra.mxu0 %v1918
    %2219 = vmatprep.subr.bf16.mxu0 %v1917
    %2220 = vmatpush1.bf16.msra.mxu0 %v1916
    %2221 = vmatprep.subr.bf16.mxu0 %v1947
    %2222 = vmatpush2.bf16.msra.mxu0 %v1946
    %2223 = vmatprep.subr.bf16.mxu0 %v1945
    %2224 = vmatpush2.bf16.msra.mxu0 %v1944
    %2225 = vmatprep.subr.bf16.mxu0 %v1943
    %2226 = vmatpush2.bf16.msra.mxu0 %v1942
    %2227 = vmatprep.subr.bf16.mxu0 %v1941
    %2228 = vmatpush2.bf16.msra.mxu0 %v1940
    %2229 = vmatprep.subr.bf16.mxu0 %v1939
    %2230 = vmatpush2.bf16.msra.mxu0 %v1938
    %2231 = vmatprep.subr.bf16.mxu0 %v1937
    %2232 = vmatpush2.bf16.msra.mxu0 %v1936
    %2233 = vmatprep.subr.bf16.mxu0 %v1935
    %2234 = vmatpush2.bf16.msra.mxu0 %v1934
    %2235 = vmatprep.subr.bf16.mxu0 %v1933
    %2236 = vmatpush2.bf16.msra.mxu0 %v1932
    %2237 = vmatprep.mubr.bf16.mxu0 %v1295
    %2238 = vmatmul.mubr.bf16.gmra.mxu0 %v1294
    %v2239 = vpop.f32.mrf.mxu0
    %v2240 = vadd.f32 %v2197, %v2239
    %v2241 = vpop.f32.mrf.mxu0
    %v2242 = vadd.f32 %v2199, %v2241
    %v2243 = vpop.f32.mrf.mxu0
    %v2244 = vadd.f32 %v2201, %v2243
    %v2245 = vpop.f32.mrf.mxu0
    %v2246 = vadd.f32 %v2203, %v2245
    %2247 = vdwg.mxu0
    %v2248 = vadd.f32 %v91, %v2240
    %v2249 = vadd.f32 %v92, %v2242
    %v2250 = vadd.f32 %v93, %v2244
    %v2251 = vadd.f32 %v94, %v2246
    %2252 = vst [vmem:[#allocation11] sm:$0xff] %v2248
    %2253 = vst [vmem:[#allocation11 + $0x8] sm:$0xff] %v2249
    %2254 = vst [vmem:[#allocation11 + $0x10] sm:$0xff] %v2250
    %2255 = vst [vmem:[#allocation11 + $0x18] sm:$0xff] %v2251
    // Predicated region
    $region50: #{attention_dense_block.1} parent=1 // pred_check
      _
    $region51: #{attention_dense_block.1} parent=1 // pred_check_branch
      %2257 = sbr.rel (0) target = $region53
    $region52: #{attention_dense_block.1} parent=1 // pred_region
      %s2259 = ssub.s32 512, 512
      %2260 = vsyncadd [#allocation4], %s2259
      %s2261 = sshll.u32 [#allocation11], 4
      %s2262 = int_to_ptr.vmem [resolvable:$true] %s2261
      %2267 = dma.vmem_to_hbm [thread:$0]  %s2262, 512, %s7, [#allocation4], 256, 256, 16
    $region53: #{attention_dense_block.1} parent=1 // pred_fallthru
      _
    // Predicated region
    $region54: #{attention_dense_block.1} parent=1 // pred_check
      _
    $region55: #{attention_dense_block.1} parent=1 // pred_check_branch
      %2269 = sbr.rel (0) target = $region57
    $region56: #{attention_dense_block.1} parent=1 // pred_region
      %2270 = dma.done [#allocation4], 512
    $region57: #{attention_dense_block.1} parent=1 // pred_fallthru
      _
    %2271 = vsyncpa [#allocation3], 1
    %2272 = vsyncpa [#allocation6], 1
    %2273 = vsyncpa [#allocation9], 1
    %2274 = vsyncpa [#allocation4], 1

</llo_original>
